<compile_context>
chip_gen: v7x
topology: tpu7x:2x2x1
jax: 0.10.0
libtpu: 0.0.40
codegen_flags: <defaults>
</compile_context>

<pallas_src>
import functools
import numpy as np
import jax
import jax.numpy as jnp
from jax import lax
from jax.experimental import pallas as pl
from jax.experimental.pallas import tpu as pltpu


# ----------------------------------------------------------------------------
# Position encoding — identical to the PyTorch reference (numpy, then f32 cast)
# ----------------------------------------------------------------------------
def position_encoding_init(n_position, emb_dim):
    position_enc = np.array(
        [[pos / np.power(10000, 2 * (j // 2) / emb_dim) for j in range(emb_dim)]
         if pos != 0 else np.zeros(emb_dim) for pos in range(n_position)])
    position_enc[1:, 0::2] = np.sin(position_enc[1:, 0::2])
    position_enc[1:, 1::2] = np.cos(position_enc[1:, 1::2])
    return jnp.asarray(position_enc, dtype=jnp.float32)


def _round_up(x, m):
    return (x + m - 1) // m * m


def _bag_counts(ids, vocab_pad):
    """Per-batch token histogram (f32).  counts @ table == gather(table, ids).sum(tokens)."""
    B = ids.shape[0]
    flat = ids.reshape(B, -1)
    b_idx = jnp.broadcast_to(jnp.arange(B, dtype=jnp.int32)[:, None], flat.shape)
    counts = jnp.zeros((B, vocab_pad), jnp.float32)
    return counts.at[b_idx, flat].add(1.0)


# ----------------------------------------------------------------------------
# Phase 1: hop recurrence.  grid=(n_hops,), "arbitrary"; u carried in the output block.
# ----------------------------------------------------------------------------
def hop_kernel(cq_ref, embq_ref, cm_ref, pos_ref, embc_ref, wh_ref, bh_ref,
               u_ref, *, d):
    h = pl.program_id(0)

    @pl.when(h == 0)
    def _init():
        # query embedding bag:  u0 = counts_q @ emb_q   (fused gather + token-sum)
        u_ref[...] = jnp.dot(cq_ref[...], embq_ref[...],
                             preferred_element_type=jnp.float32)

    u = u_ref[...]                                           # (B_pad, d) carried in VMEM

    # p_attn over the singleton query axis is exactly 1 -> attention output is the plain
    # sentence/token bag-sum of this hop's context embeddings:
    #   o = counts_mem @ emb_C[h] + S * sum_l pos[l]
    o = (jnp.dot(cm_ref[...], embc_ref[0], preferred_element_type=jnp.float32)
         + pos_ref[...])

    # MQAttention linear:  x = (o + u) @ W_hop[h]^T + b_hop[h]      (weight pre-transposed)
    x = jnp.dot(o + u, wh_ref[0], preferred_element_type=jnp.float32) + bh_ref[0]

    # LayerNorm exactly as the reference: a=1, b=0, unbiased (d-1) var, eps ADDED after div.
    mu = jnp.mean(x, axis=-1, keepdims=True)
    var = jnp.sum((x - mu) ** 2, axis=-1, keepdims=True) * (1.0 / (d - 1))
    u_ref[...] = (x - mu) * lax.rsqrt(var) + 1e-05           # rsqrt -> EUP slot


# ----------------------------------------------------------------------------
# Phase 2: vocab-tiled classifier.  grid=(n_vtiles,), "parallel"; pure W_cls bandwidth.
# ----------------------------------------------------------------------------
def classifier_kernel(u_ref, w_ref, b_ref, out_ref):
    out_ref[...] = (jnp.dot(u_ref[...], w_ref[...],
                            preferred_element_type=jnp.float32) + b_ref[...])


# ----------------------------------------------------------------------------
# Wrapper
# ----------------------------------------------------------------------------
def memory_network_forward(query_ids, memory_ids, params, *, n_hops, d, vocab_size,
                           cls_weight_dtype=jnp.bfloat16):
    B, S, L = memory_ids.shape

    # ------- hardware-aware sizing (v7x: 64 MiB VMEM/TC, v5e/v6e: 128 MiB) -------
    try:
        vmem_cap = int(pltpu.get_tpu_info().vmem_capacity_bytes)
    except Exception:
        vmem_cap = 64 * 1024 * 1024                      # conservative (v7x per-TC)
    vmem_limit = min(vmem_cap * 3 // 4, 112 << 20)       # explicit, above scoped default

    B_pad = _round_up(B, 8)                              # sublane-dense batch
    V_emb = _round_up(vocab_size, 128)                   # lane-dense bag-matmul contraction
    V_pad = _round_up(vocab_size, 128)                   # lane-dense classifier output

    w_bytes = jnp.dtype(cls_weight_dtype).itemsize
    tile_v = min(4096, V_pad)

    def _cls_tile_bytes(t):                              # worst-case per-tile VMEM footprint
        return (3 * d * t * w_bytes                      # up-to-triple-buffered W_cls tile
                + 2 * B_pad * t * 4                      # double-buffered output tile
                + 2 * t * 4)                             # bias tile

    while tile_v > 128 and _cls_tile_bytes(tile_v) > vmem_limit // 2:
        tile_v -= 128
    if V_pad >= 256:                                     # >=2 vocab tiles -> both v7x TCs work
        tile_v = min(tile_v, max(128, (V_pad // 2) // 128 * 128))
    while V_pad % tile_v != 0:                           # tile must divide padded vocab
        tile_v -= 128
    n_vtiles = V_pad // tile_v

    # ------- tiny XLA glue: histograms + constants (no (B,S,L,d) intermediate) -------
    pos = position_encoding_init(L, d)                               # (L, d)
    pos_sum = (float(S) * jnp.sum(pos, axis=0))[None, :]             # (1, d)

    counts_q = jnp.pad(_bag_counts(query_ids, V_emb), ((0, B_pad - B), (0, 0)))
    counts_m = jnp.pad(_bag_counts(memory_ids, V_emb), ((0, B_pad - B), (0, 0)))

    vpad = ((0, V_emb - vocab_size), (0, 0))
    embq = jnp.pad(params["emb_q"], vpad)                            # (V_emb, d)
    embc = jnp.stack([jnp.pad(params["emb_C"][h], vpad)
                      for h in range(n_hops)])                       # (N, V_emb, d)
    wh = jnp.stack([params["W_hop"][h].T for h in range(n_hops)])    # (N, d, d)
    bh = jnp.stack([params["b_hop"][h] for h in range(n_hops)])[:, None, :]   # (N, 1, d)

    # ------- phase 1: hop recurrence -------
    u_final = pl.pallas_call(
        functools.partial(hop_kernel, d=d),
        out_shape=jax.ShapeDtypeStruct((B_pad, d), jnp.float32),
        grid_spec=pltpu.PrefetchScalarGridSpec(
            num_scalar_prefetch=0,
            grid=(n_hops,),
            in_specs=[
                pl.BlockSpec((B_pad, V_emb), lambda h: (0, 0)),     # counts_q (resident)
                pl.BlockSpec((V_emb, d), lambda h: (0, 0)),         # emb_q    (resident)
                pl.BlockSpec((B_pad, V_emb), lambda h: (0, 0)),     # counts_m (resident)
                pl.BlockSpec((1, d), lambda h: (0, 0)),             # pos bag  (resident)
                pl.BlockSpec((1, V_emb, d), lambda h: (h, 0, 0)),   # emb_C[h] (streamed/hop)
                pl.BlockSpec((1, d, d), lambda h: (h, 0, 0)),       # W_hop[h]^T
                pl.BlockSpec((1, 1, d), lambda h: (h, 0, 0)),       # b_hop[h]
            ],
            out_specs=pl.BlockSpec((B_pad, d), lambda h: (0, 0)),   # u carried (resident)
        ),
        compiler_params=pltpu.CompilerParams(
            dimension_semantics=("arbitrary",),
            vmem_limit_bytes=vmem_limit),
    )(counts_q, embq, counts_m, pos_sum, embc, wh, bh)

    # ------- phase 2: vocab-tiled classifier (bf16 weight/activation stream) -------
    u_bf = u_final.astype(jnp.bfloat16)
    wcls = jnp.pad(params["W_cls"].T,
                   ((0, 0), (0, V_pad - vocab_size))).astype(cls_weight_dtype)   # (d, V_pad)
    bcls = jnp.pad(params["b_cls"], (0, V_pad - vocab_size))[None, :]            # (1, V_pad)

    wcls_kwargs = {}
    if n_vtiles >= 3:
        wcls_kwargs["pipeline_mode"] = pl.Buffered(3)   # deeper prefetch on the weight stream

    out = pl.pallas_call(
        classifier_kernel,
        out_shape=jax.ShapeDtypeStruct((B_pad, V_pad), jnp.float32),
        grid_spec=pltpu.PrefetchScalarGridSpec(
            num_scalar_prefetch=0,
            grid=(n_vtiles,),
            in_specs=[
                pl.BlockSpec((B_pad, d), lambda v: (0, 0)),                   # u (resident)
                pl.BlockSpec((d, tile_v), lambda v: (0, v), **wcls_kwargs),   # W_cls tile
                pl.BlockSpec((1, tile_v), lambda v: (0, v)),                  # b_cls tile
            ],
            out_specs=pl.BlockSpec((B_pad, tile_v), lambda v: (0, v)),
        ),
        compiler_params=pltpu.CompilerParams(
            dimension_semantics=("parallel",),
            vmem_limit_bytes=vmem_limit),
    )(u_bf, wcls, bcls)

    # strip padding; (B, 1, V) matches the PyTorch unsqueeze(1) propagation
    return out[:B, :vocab_size][:, None, :]


# ----------------------------------------------------------------------------
# Pure-JAX reference (mirrors the PyTorch module exactly) for verification
# ----------------------------------------------------------------------------
def reference_forward(query_ids, memory_ids, params, *, n_hops, d, vocab_size):
    B, S, L = memory_ids.shape
    pos = position_encoding_init(L, d)
    u = jnp.take(params["emb_q"], query_ids, axis=0).sum(axis=-2)[:, None, :]  # (B,1,d)
    mask = jnp.sum(memory_ids, axis=-1).astype(jnp.float32)                    # (B,S)
    for h in range(n_hops):
        m = (jnp.take(params["emb_A"][h], memory_ids, axis=0) + pos).sum(axis=-2)
        c = (jnp.take(params["emb_C"][h], memory_ids, axis=0) + pos).sum(axis=-2)
        scores = jnp.einsum("bqd,bsd->bqs", u, m) / np.sqrt(d)
        scores = jnp.where(mask[:, None, :] == 0, -1000000000.0, scores)
        p = jax.nn.softmax(scores, axis=-2)              # softmax over singleton q-axis
        o = jnp.einsum("bqs,bsd->bqd", p, c)
        x = jnp.einsum("bqd,ed->bqe", o + u, params["W_hop"][h]) + params["b_hop"][h]
        mu = x.mean(-1, keepdims=True)
        std = jnp.sqrt(jnp.sum((x - mu) ** 2, -1, keepdims=True) / (d - 1))
        u = (x - mu) / std + 1e-05
    return jnp.einsum("bqd,vd->bqv", u, params["W_cls"]) + params["b_cls"]


# ----------------------------------------------------------------------------
if __name__ == "__main__":
    # small shapes consistent with the module
    vocab_size, d, N = 1000, 32, 3        # MemoryNetwork(vocab_size, d, N)
    B, S, L, Lq = 2, 8, 6, 5              # batch, #sentences, sentence len, query len

    key = jax.random.PRNGKey(0)
    ks = list(jax.random.split(key, 3 + 4 * N + 2))

    # deterministic synthetic parameters (shapes per the module __init__)
    params = {
        "emb_q": 0.1 * jax.random.normal(ks[0], (vocab_size, d), jnp.float32),
        "W_cls": 0.1 * jax.random.normal(ks[1], (vocab_size, d), jnp.float32),
        "b_cls": 0.1 * jax.random.normal(ks[2], (vocab_size,), jnp.float32),
        "emb_A": [0.1 * jax.random.normal(ks[3 + 4 * h + 0], (vocab_size, d), jnp.float32)
                  for h in range(N)],
        "emb_C": [0.1 * jax.random.normal(ks[3 + 4 * h + 1], (vocab_size, d), jnp.float32)
                  for h in range(N)],
        "W_hop": [0.1 * jax.random.normal(ks[3 + 4 * h + 2], (d, d), jnp.float32)
                  for h in range(N)],
        "b_hop": [0.1 * jax.random.normal(ks[3 + 4 * h + 3], (d,), jnp.float32)
                  for h in range(N)],
    }

    # deterministic synthetic inputs (token ids); one all-padding sentence (mask==0 path),
    # which — exactly as in the reference — does not affect the output.
    query_ids = jax.random.randint(ks[-2], (B, Lq), 0, vocab_size, dtype=jnp.int32)
    memory_ids = jax.random.randint(ks[-1], (B, S, L), 0, vocab_size, dtype=jnp.int32)
    memory_ids = memory_ids.at[0, -1, :].set(0)

    out = memory_network_forward(query_ids, memory_ids, params,
                                 n_hops=N, d=d, vocab_size=vocab_size)
    out = jax.block_until_ready(out)

    ref = reference_forward(query_ids, memory_ids, params,
                            n_hops=N, d=d, vocab_size=vocab_size)
    ref = jax.block_until_ready(ref)

    assert out.shape == (B, 1, vocab_size), out.shape
    # Hop path is f32; the only deviation from the f32 reference is the bf16 classifier
    # weight/activation stream (perf-review item) -> expected max error O(5e-3) at these
    # magnitudes, so a 2e-2 tolerance is a tight, meaningful check.
    np.testing.assert_allclose(np.asarray(out), np.asarray(ref), rtol=2e-2, atol=2e-2)
    print("KERNEL_OK")
</pallas_src>

<mosaic_0001>
module attributes {stable_mosaic.version = 11 : i64} {
  func.func @hop_kernel(%arg0: i32, %arg1: memref<8x1024xf32, #tpu.memory_space<vmem>>, %arg2: memref<1024x32xf32, #tpu.memory_space<vmem>>, %arg3: memref<8x1024xf32, #tpu.memory_space<vmem>>, %arg4: memref<1x32xf32, #tpu.memory_space<vmem>>, %arg5: memref<1x1024x32xf32, #tpu.memory_space<vmem>>, %arg6: memref<1x32x32xf32, #tpu.memory_space<vmem>>, %arg7: memref<1x1x32xf32, #tpu.memory_space<vmem>>, %arg8: memref<8x32xf32, #tpu.memory_space<vmem>>) attributes {dimension_semantics = [#tpu.dimension_semantics<arbitrary>], iteration_bounds = array<i64: 3>, scalar_prefetch = 0 : i64, scratch_operands = 0 : i64, tpu.core_type = #tpu.core_type<tc>, window_params = [{pipeline_mode = #tpu.pipeline_mode<synchronous>, transform_indices = @transform_0, window_bounds = array<i64: 8, 1024>}, {pipeline_mode = #tpu.pipeline_mode<synchronous>, transform_indices = @transform_1, window_bounds = array<i64: 1024, 32>}, {pipeline_mode = #tpu.pipeline_mode<synchronous>, transform_indices = @transform_2, window_bounds = array<i64: 8, 1024>}, {pipeline_mode = #tpu.pipeline_mode<synchronous>, transform_indices = @transform_3, window_bounds = array<i64: 1, 32>}, {transform_indices = @transform_4, window_bounds = array<i64: 1, 1024, 32>}, {transform_indices = @transform_5, window_bounds = array<i64: 1, 32, 32>}, {transform_indices = @transform_6, window_bounds = array<i64: 1, 1, 32>}, {pipeline_mode = #tpu.pipeline_mode<synchronous>, transform_indices = @transform_7, window_bounds = array<i64: 8, 32>}]} {
    %c0_i32 = arith.constant 0 : i32
    %0 = arith.cmpi eq, %arg0, %c0_i32 : i32
    %1 = arith.extui %0 : i1 to i32
    %c0_i32_0 = arith.constant 0 : i32
    %2 = arith.cmpi ne, %1, %c0_i32_0 : i32
    scf.if %2 {
      %c0_23 = arith.constant 0 : index
      %c0_24 = arith.constant 0 : index
      %38 = vector.load %arg1[%c0_23, %c0_24] : memref<8x1024xf32, #tpu.memory_space<vmem>>, vector<8x1024xf32>
      %c0_25 = arith.constant 0 : index
      %c0_26 = arith.constant 0 : index
      %39 = vector.load %arg2[%c0_25, %c0_26] : memref<1024x32xf32, #tpu.memory_space<vmem>>, vector<1024x32xf32>
      %cst_27 = arith.constant dense<0.000000e+00> : vector<8x32xf32>
      %40 = tpu.matmul %38, %39, %cst_27 {dimension_numbers = #tpu.dot_dimension_numbers<[1], [0], [0], [1], [0, 0, 1, 1], [], []>} : vector<8x1024xf32>, vector<1024x32xf32>, vector<8x32xf32> -> vector<8x32xf32>
      %c0_28 = arith.constant 0 : index
      %c0_29 = arith.constant 0 : index
      %41 = vector.load %arg8[%c0_28, %c0_29] : memref<8x32xf32, #tpu.memory_space<vmem>>, vector<8x32xf32>
      tpu.vector_store %arg8[%c0_28, %c0_29], %40 {strides = array<i32>} : memref<8x32xf32, #tpu.memory_space<vmem>>, vector<8x32xf32>,
    } else {
    }
    %c0 = arith.constant 0 : index
    %c0_1 = arith.constant 0 : index
    %3 = vector.load %arg8[%c0, %c0_1] : memref<8x32xf32, #tpu.memory_space<vmem>>, vector<8x32xf32>
    %c0_2 = arith.constant 0 : index
    %c0_3 = arith.constant 0 : index
    %4 = vector.load %arg3[%c0_2, %c0_3] : memref<8x1024xf32, #tpu.memory_space<vmem>>, vector<8x1024xf32>
    %c0_4 = arith.constant 0 : index
    %c0_5 = arith.constant 0 : index
    %c0_6 = arith.constant 0 : index
    %5 = vector.load %arg5[%c0_4, %c0_5, %c0_6] : memref<1x1024x32xf32, #tpu.memory_space<vmem>>, vector<1x1024x32xf32>
    %6 = vector.shape_cast %5 : vector<1x1024x32xf32> to vector<1024x32xf32>
    %cst = arith.constant dense<0.000000e+00> : vector<8x32xf32>
    %7 = tpu.matmul %4, %6, %cst {dimension_numbers = #tpu.dot_dimension_numbers<[1], [0], [0], [1], [0, 0, 1, 1], [], []>} : vector<8x1024xf32>, vector<1024x32xf32>, vector<8x32xf32> -> vector<8x32xf32>
    %c0_7 = arith.constant 0 : index
    %c0_8 = arith.constant 0 : index
    %8 = vector.load %arg4[%c0_7, %c0_8] : memref<1x32xf32, #tpu.memory_space<vmem>>, vector<1x32xf32>
    %9 = vector.broadcast %8 : vector<1x32xf32> to vector<8x32xf32>
    %10 = arith.addf %7, %9 : vector<8x32xf32>
    %11 = arith.addf %10, %3 : vector<8x32xf32>
    %c0_9 = arith.constant 0 : index
    %c0_10 = arith.constant 0 : index
    %c0_11 = arith.constant 0 : index
    %12 = vector.load %arg6[%c0_9, %c0_10, %c0_11] : memref<1x32x32xf32, #tpu.memory_space<vmem>>, vector<1x32x32xf32>
    %13 = vector.shape_cast %12 : vector<1x32x32xf32> to vector<32x32xf32>
    %cst_12 = arith.constant dense<0.000000e+00> : vector<8x32xf32>
    %14 = tpu.matmul %11, %13, %cst_12 {dimension_numbers = #tpu.dot_dimension_numbers<[1], [0], [0], [1], [0, 0, 1, 1], [], []>} : vector<8x32xf32>, vector<32x32xf32>, vector<8x32xf32> -> vector<8x32xf32>
    %c0_13 = arith.constant 0 : index
    %c0_14 = arith.constant 0 : index
    %c0_15 = arith.constant 0 : index
    %15 = vector.load %arg7[%c0_13, %c0_14, %c0_15] : memref<1x1x32xf32, #tpu.memory_space<vmem>>, vector<1x1x32xf32>
    %16 = vector.shape_cast %15 : vector<1x1x32xf32> to vector<1x32xf32>
    %17 = vector.broadcast %16 : vector<1x32xf32> to vector<8x32xf32>
    %18 = arith.addf %14, %17 : vector<8x32xf32>
    %cst_16 = arith.constant dense<0.000000e+00> : vector<8xf32>
    %19 = vector.multi_reduction <add>, %18, %cst_16 [1] : vector<8x32xf32> to vector<8xf32>
    %20 = vector.shape_cast %19 : vector<8xf32> to vector<8x1xf32>
    %cst_17 = arith.constant 3.200000e+01 : f32
    %21 = vector.broadcast %cst_17 : f32 to vector<8x1xf32>
    %22 = arith.divf %20, %21 : vector<8x1xf32>
    %23 = vector.broadcast %22 : vector<8x1xf32> to vector<8x32xf32>
    %24 = arith.subf %18, %23 : vector<8x32xf32>
    %25 = arith.mulf %24, %24 : vector<8x32xf32>
    %cst_18 = arith.constant dense<0.000000e+00> : vector<8xf32>
    %26 = vector.multi_reduction <add>, %25, %cst_18 [1] : vector<8x32xf32> to vector<8xf32>
    %27 = vector.shape_cast %26 : vector<8xf32> to vector<8x1xf32>
    %cst_19 = arith.constant 0.0322580636 : f32
    %28 = vector.broadcast %cst_19 : f32 to vector<8x1xf32>
    %29 = arith.mulf %27, %28 : vector<8x1xf32>
    %30 = vector.broadcast %22 : vector<8x1xf32> to vector<8x32xf32>
    %31 = arith.subf %18, %30 : vector<8x32xf32>
    %32 = math.rsqrt %29 : vector<8x1xf32>
    %33 = vector.broadcast %32 : vector<8x1xf32> to vector<8x32xf32>
    %34 = arith.mulf %31, %33 : vector<8x32xf32>
    %cst_20 = arith.constant 9.99999974E-6 : f32
    %35 = vector.broadcast %cst_20 : f32 to vector<8x32xf32>
    %36 = arith.addf %34, %35 : vector<8x32xf32>
    %c0_21 = arith.constant 0 : index
    %c0_22 = arith.constant 0 : index
    %37 = vector.load %arg8[%c0_21, %c0_22] : memref<8x32xf32, #tpu.memory_space<vmem>>, vector<8x32xf32>
    tpu.vector_store %arg8[%c0_21, %c0_22], %36 {strides = array<i32>} : memref<8x32xf32, #tpu.memory_space<vmem>>, vector<8x32xf32>,
    return
  }
  func.func @transform_0(%arg0: i32) -> (i32, i32) {
    %c0_i32 = arith.constant 0 : i32
    %c0_i32_0 = arith.constant 0 : i32
    %c0_i32_1 = arith.constant 0 : i32
    return %c0_i32, %c0_i32_0 : i32, i32
  }
  func.func @transform_1(%arg0: i32) -> (i32, i32) {
    %c0_i32 = arith.constant 0 : i32
    %c0_i32_0 = arith.constant 0 : i32
    %c0_i32_1 = arith.constant 0 : i32
    return %c0_i32, %c0_i32_0 : i32, i32
  }
  func.func @transform_2(%arg0: i32) -> (i32, i32) {
    %c0_i32 = arith.constant 0 : i32
    %c0_i32_0 = arith.constant 0 : i32
    %c0_i32_1 = arith.constant 0 : i32
    return %c0_i32, %c0_i32_0 : i32, i32
  }
  func.func @transform_3(%arg0: i32) -> (i32, i32) {
    %c0_i32 = arith.constant 0 : i32
    %c0_i32_0 = arith.constant 0 : i32
    %c0_i32_1 = arith.constant 0 : i32
    return %c0_i32, %c0_i32_0 : i32, i32
  }
  func.func @transform_4(%arg0: i32) -> (i32, i32, i32) {
    %c0_i32 = arith.constant 0 : i32
    %c0_i32_0 = arith.constant 0 : i32
    %c0_i32_1 = arith.constant 0 : i32
    return %arg0, %c0_i32, %c0_i32_0 : i32, i32, i32
  }
  func.func @transform_5(%arg0: i32) -> (i32, i32, i32) {
    %c0_i32 = arith.constant 0 : i32
    %c0_i32_0 = arith.constant 0 : i32
    %c0_i32_1 = arith.constant 0 : i32
    return %arg0, %c0_i32, %c0_i32_0 : i32, i32, i32
  }
  func.func @transform_6(%arg0: i32) -> (i32, i32, i32) {
    %c0_i32 = arith.constant 0 : i32
    %c0_i32_0 = arith.constant 0 : i32
    %c0_i32_1 = arith.constant 0 : i32
    return %arg0, %c0_i32, %c0_i32_0 : i32, i32, i32
  }
  func.func @transform_7(%arg0: i32) -> (i32, i32) {
    %c0_i32 = arith.constant 0 : i32
    %c0_i32_0 = arith.constant 0 : i32
    %c0_i32_1 = arith.constant 0 : i32
    return %c0_i32, %c0_i32_0 : i32, i32
  }
}

</mosaic_0001>

<llo_original>
// kernel: tpu_custom_call.1
$region0: #{tpu_custom_call.1}
  #allocation0 [shape = 'u32[]', space=smem, size = 0x4, offset = 0x4, fixed_abs, tag = 'smem constant byte address 0x4 - core index']
  #allocation1 [shape = 'u32[144,128]{1,0:T(1,128)}', space=vmem, size = 0x12000, scoped, tag = 'internal scratch']
  %s0 = inlined_call_operand.vmem [shape: f32[8,1024], index: 0, kind: input, shape index: {}]
  %s1 = inlined_call_operand.vmem [shape: f32[1024,32], index: 1, kind: input, shape index: {}]
  %s2 = inlined_call_operand.vmem [shape: f32[8,1024], index: 2, kind: input, shape index: {}]
  %s3 = inlined_call_operand.vmem [shape: f32[1,32], index: 3, kind: input, shape index: {}]
  %s4 = inlined_call_operand.vmem [shape: f32[3,1024,32], index: 4, kind: input, shape index: {}]
  %s5 = inlined_call_operand.vmem [shape: f32[3,32,32], index: 5, kind: input, shape index: {}]
  %s6 = inlined_call_operand.vmem [shape: f32[3,1,32], index: 6, kind: input, shape index: {}]
  %s7 = inlined_call_operand.hbm [shape: f32[8,32], index: 7, kind: output, shape index: {}]
  %s8 = sld [smem:[#allocation0]]
  $region65: #{tpu_custom_call.1} parent=0
    _
  %s10 = ssub.s32 1, %s8
  %s11 = scalar_select 0, %s10, %s8
  $region1: #{tpu_custom_call.1} parent=0
    #allocation2 [shape = 'u8[4096]{0}', space=vmem, size = 0x1000, scoped, tag = 'output window, operand 0, single buffered']
    #allocation3 [shape = 's32[2]{0}', space=sflag, size = 0x8, scoped, tag = 'scoped memory for tpu_custom_call.1']
    %12 = vsyncpa [#allocation3], 0
    loop: start=0, step=1, limit=5
    $region2: #{tpu_custom_call.1} parent=1 // loop_pre_header
      _
    $region3: #{tpu_custom_call.1} parent=1 // loop_header
      %s14 = sphi 0, %s18
      %p15 = scmp.ge.s32.totalorder %s14, 5
      %s22 = sphi 0, %s22
      %s24 = sphi 0, %s22
      %s25 = sphi 0, %s24
      %s39 = sphi 0, %s25
      %s43 = sphi 0, %s43
      %s45 = sphi 0, %s43
      %s46 = sphi 0, %s45
      %s60 = sphi 0, %s46
      %s64 = sphi 0, %s64
      %s66 = sphi 0, %s64
      %s67 = sphi 0, %s66
      %s81 = sphi 0, %s67
      %s85 = sphi 0, %s85
      %s87 = sphi 0, %s85
      %s88 = sphi 0, %s87
      %s102 = sphi 0, %s88
      %s108 = sphi 0, %s110
      %s111 = sphi 0, %s108
      %s112 = sphi 0, %s111
      %s128 = sphi 0, %s112
      %s134 = sphi 0, %s136
      %s137 = sphi 0, %s134
      %s138 = sphi 0, %s137
      %s154 = sphi 0, %s138
      %s160 = sphi 0, %s162
      %s163 = sphi 0, %s160
      %s164 = sphi 0, %s163
      %s180 = sphi 0, %s164
      %s184 = sphi 0, %s184
      %s186 = sphi 0, %s184
      %s187 = sphi 0, %s186
      %s201 = sphi 0, %s187
    $region4: #{tpu_custom_call.1} parent=1 // loop_header_branch
      %17 = sbr.rel (%p15) target = $region8
    $region5: #{tpu_custom_call.1} parent=1 // loop_body
      %s19 = ssub.s32 %s14, 1
      %s20 = ssub.s32 %s14, 2
      %s21 = sadd.s32 %s14, 1
      %s23 = sadd.s32 %s22, 1
      %p26 = scmp.eq.s32.totalorder %s14, 2
      %p27 = scmp.ne.s32.totalorder %s22, %s24
      %p28 = scmp.eq.s32.totalorder %s14, 0
      %p29 = por %p27, %p28
      %p30 = scmp.ne.s32.totalorder %s22, %s24
      %p31 = scmp.eq.s32.totalorder %s19, 2
      %p32 = por %p30, %p31
      %p33 = scmp.ne.s32.totalorder %s24, %s25
      %p34 = scmp.eq.s32.totalorder %s19, 0
      %p35 = por %p33, %p34
      %p36 = scmp.ne.s32.totalorder %s24, %s25
      %p37 = scmp.eq.s32.totalorder %s20, 2
      %p38 = por %p36, %p37
      %p40 = scmp.ne.s32.totalorder %s25, %s39
      %p41 = scmp.eq.s32.totalorder %s20, 0
      %p42 = por %p40, %p41
      %s44 = sadd.s32 %s43, 1
      %p47 = scmp.eq.s32.totalorder %s14, 2
      %p48 = scmp.ne.s32.totalorder %s43, %s45
      %p49 = scmp.eq.s32.totalorder %s14, 0
      %p50 = por %p48, %p49
      %p51 = scmp.ne.s32.totalorder %s43, %s45
      %p52 = scmp.eq.s32.totalorder %s19, 2
      %p53 = por %p51, %p52
      %p54 = scmp.ne.s32.totalorder %s45, %s46
      %p55 = scmp.eq.s32.totalorder %s19, 0
      %p56 = por %p54, %p55
      %p57 = scmp.ne.s32.totalorder %s45, %s46
      %p58 = scmp.eq.s32.totalorder %s20, 2
      %p59 = por %p57, %p58
      %p61 = scmp.ne.s32.totalorder %s46, %s60
      %p62 = scmp.eq.s32.totalorder %s20, 0
      %p63 = por %p61, %p62
      %s65 = sadd.s32 %s64, 1
      %p68 = scmp.eq.s32.totalorder %s14, 2
      %p69 = scmp.ne.s32.totalorder %s64, %s66
      %p70 = scmp.eq.s32.totalorder %s14, 0
      %p71 = por %p69, %p70
      %p72 = scmp.ne.s32.totalorder %s64, %s66
      %p73 = scmp.eq.s32.totalorder %s19, 2
      %p74 = por %p72, %p73
      %p75 = scmp.ne.s32.totalorder %s66, %s67
      %p76 = scmp.eq.s32.totalorder %s19, 0
      %p77 = por %p75, %p76
      %p78 = scmp.ne.s32.totalorder %s66, %s67
      %p79 = scmp.eq.s32.totalorder %s20, 2
      %p80 = por %p78, %p79
      %p82 = scmp.ne.s32.totalorder %s67, %s81
      %p83 = scmp.eq.s32.totalorder %s20, 0
      %p84 = por %p82, %p83
      %s86 = sadd.s32 %s85, 1
      %p89 = scmp.eq.s32.totalorder %s14, 2
      %p90 = scmp.ne.s32.totalorder %s85, %s87
      %p91 = scmp.eq.s32.totalorder %s14, 0
      %p92 = por %p90, %p91
      %p93 = scmp.ne.s32.totalorder %s85, %s87
      %p94 = scmp.eq.s32.totalorder %s19, 2
      %p95 = por %p93, %p94
      %p96 = scmp.ne.s32.totalorder %s87, %s88
      %p97 = scmp.eq.s32.totalorder %s19, 0
      %p98 = por %p96, %p97
      %p99 = scmp.ne.s32.totalorder %s87, %s88
      %p100 = scmp.eq.s32.totalorder %s20, 2
      %p101 = por %p99, %p100
      %p103 = scmp.ne.s32.totalorder %s88, %s102
      %p104 = scmp.eq.s32.totalorder %s20, 0
      %p105 = por %p103, %p104
      %s106 = ssub.s32 %s14, %s21
      %p107 = scmp.eq.s32.totalorder %s106, 0
      %s109 = sadd.s32 %s108, 1
      %s110 = scalar_select %p107, %s108, %s109
      %p113 = pneg %p107
      %p114 = scmp.eq.s32.totalorder %s14, 2
      %p115 = por %p113, %p114
      %p116 = scmp.ne.s32.totalorder %s108, %s111
      %p117 = scmp.eq.s32.totalorder %s14, 0
      %p118 = por %p116, %p117
      %p119 = scmp.ne.s32.totalorder %s108, %s111
      %p120 = scmp.eq.s32.totalorder %s19, 2
      %p121 = por %p119, %p120
      %p122 = scmp.ne.s32.totalorder %s111, %s112
      %p123 = scmp.eq.s32.totalorder %s19, 0
      %p124 = por %p122, %p123
      %p125 = scmp.ne.s32.totalorder %s111, %s112
      %p126 = scmp.eq.s32.totalorder %s20, 2
      %p127 = por %p125, %p126
      %p129 = scmp.ne.s32.totalorder %s112, %s128
      %p130 = scmp.eq.s32.totalorder %s20, 0
      %p131 = por %p129, %p130
      %s132 = ssub.s32 %s14, %s21
      %p133 = scmp.eq.s32.totalorder %s132, 0
      %s135 = sadd.s32 %s134, 1
      %s136 = scalar_select %p133, %s134, %s135
      %p139 = pneg %p133
      %p140 = scmp.eq.s32.totalorder %s14, 2
      %p141 = por %p139, %p140
      %p142 = scmp.ne.s32.totalorder %s134, %s137
      %p143 = scmp.eq.s32.totalorder %s14, 0
      %p144 = por %p142, %p143
      %p145 = scmp.ne.s32.totalorder %s134, %s137
      %p146 = scmp.eq.s32.totalorder %s19, 2
      %p147 = por %p145, %p146
      %p148 = scmp.ne.s32.totalorder %s137, %s138
      %p149 = scmp.eq.s32.totalorder %s19, 0
      %p150 = por %p148, %p149
      %p151 = scmp.ne.s32.totalorder %s137, %s138
      %p152 = scmp.eq.s32.totalorder %s20, 2
      %p153 = por %p151, %p152
      %p155 = scmp.ne.s32.totalorder %s138, %s154
      %p156 = scmp.eq.s32.totalorder %s20, 0
      %p157 = por %p155, %p156
      %s158 = ssub.s32 %s14, %s21
      %p159 = scmp.eq.s32.totalorder %s158, 0
      %s161 = sadd.s32 %s160, 1
      %s162 = scalar_select %p159, %s160, %s161
      %p165 = pneg %p159
      %p166 = scmp.eq.s32.totalorder %s14, 2
      %p167 = por %p165, %p166
      %p168 = scmp.ne.s32.totalorder %s160, %s163
      %p169 = scmp.eq.s32.totalorder %s14, 0
      %p170 = por %p168, %p169
      %p171 = scmp.ne.s32.totalorder %s160, %s163
      %p172 = scmp.eq.s32.totalorder %s19, 2
      %p173 = por %p171, %p172
      %p174 = scmp.ne.s32.totalorder %s163, %s164
      %p175 = scmp.eq.s32.totalorder %s19, 0
      %p176 = por %p174, %p175
      %p177 = scmp.ne.s32.totalorder %s163, %s164
      %p178 = scmp.eq.s32.totalorder %s20, 2
      %p179 = por %p177, %p178
      %p181 = scmp.ne.s32.totalorder %s164, %s180
      %p182 = scmp.eq.s32.totalorder %s20, 0
      %p183 = por %p181, %p182
      %s185 = sadd.s32 %s184, 1
      %p188 = scmp.eq.s32.totalorder %s14, 2
      %p189 = scmp.ne.s32.totalorder %s184, %s186
      %p190 = scmp.eq.s32.totalorder %s14, 0
      %p191 = por %p189, %p190
      %p192 = scmp.ne.s32.totalorder %s184, %s186
      %p193 = scmp.eq.s32.totalorder %s19, 2
      %p194 = por %p192, %p193
      %p195 = scmp.ne.s32.totalorder %s186, %s187
      %p196 = scmp.eq.s32.totalorder %s19, 0
      %p197 = por %p195, %p196
      %p198 = scmp.ne.s32.totalorder %s186, %s187
      %p199 = scmp.eq.s32.totalorder %s20, 2
      %p200 = por %p198, %p199
      %p202 = scmp.ne.s32.totalorder %s187, %s201
      %p203 = scmp.eq.s32.totalorder %s20, 0
      %p204 = por %p202, %p203
      %p205 = scmp.le.s32.totalorder 1, %s14
      %p206 = scmp.lt.s32.totalorder %s14, 4
      %p207 = pnand %p205, %p206
      %p208 = pneg %p207
      // Predicated region
      $region9: #{tpu_custom_call.1} parent=5 // pred_check
        _
      $region10: #{tpu_custom_call.1} parent=5 // pred_check_branch
        %210 = sbr.rel (%p207) target = $region12
      $region11: #{tpu_custom_call.1} parent=5 // pred_region
        %s211 = ssub.s32 %s14, 1
        // Predicated region
        $region13: #{tpu_custom_call.1} parent=11 // pred_check
          %p212 = pneg %p35
        $region14: #{tpu_custom_call.1} parent=11 // pred_check_branch
          %214 = sbr.rel (%p212) target = $region16
        $region15: #{tpu_custom_call.1} parent=11 // pred_region
          _
        $region16: #{tpu_custom_call.1} parent=11 // pred_fallthru
          _
        // Predicated region
        $region17: #{tpu_custom_call.1} parent=11 // pred_check
          %p215 = pneg %p56
        $region18: #{tpu_custom_call.1} parent=11 // pred_check_branch
          %217 = sbr.rel (%p215) target = $region20
        $region19: #{tpu_custom_call.1} parent=11 // pred_region
          _
        $region20: #{tpu_custom_call.1} parent=11 // pred_fallthru
          _
        // Predicated region
        $region21: #{tpu_custom_call.1} parent=11 // pred_check
          %p218 = pneg %p77
        $region22: #{tpu_custom_call.1} parent=11 // pred_check_branch
          %220 = sbr.rel (%p218) target = $region24
        $region23: #{tpu_custom_call.1} parent=11 // pred_region
          _
        $region24: #{tpu_custom_call.1} parent=11 // pred_fallthru
          _
        // Predicated region
        $region25: #{tpu_custom_call.1} parent=11 // pred_check
          %p221 = pneg %p98
        $region26: #{tpu_custom_call.1} parent=11 // pred_check_branch
          %223 = sbr.rel (%p221) target = $region28
        $region27: #{tpu_custom_call.1} parent=11 // pred_region
          _
        $region28: #{tpu_custom_call.1} parent=11 // pred_fallthru
          _
      $region12: #{tpu_custom_call.1} parent=5 // pred_fallthru
        _
      %p224 = scmp.lt.s32.totalorder %s14, 3
      // Predicated region
      $region29: #{tpu_custom_call.1} parent=5 // pred_check
        %p225 = pneg %p224
      $region30: #{tpu_custom_call.1} parent=5 // pred_check_branch
        %227 = sbr.rel (%p225) target = $region32
      $region31: #{tpu_custom_call.1} parent=5 // pred_region
        // Predicated region
        $region33: #{tpu_custom_call.1} parent=31 // pred_check
          %p228 = pneg %p118
        $region34: #{tpu_custom_call.1} parent=31 // pred_check_branch
          %230 = sbr.rel (%p228) target = $region36
        $region35: #{tpu_custom_call.1} parent=31 // pred_region
          %p231 = scmp.lt.s32.totalorder %s14, 2
          %s232 = scalar_select %p231, %s14, 2
          %s233 = smul.addr %s232, 128
          %s234 = smul.addr %s233, 8
          %s235 = scalar_lea.vmem %s4, %s234
        $region36: #{tpu_custom_call.1} parent=31 // pred_fallthru
          _
        // Predicated region
        $region37: #{tpu_custom_call.1} parent=31 // pred_check
          %p236 = pneg %p144
        $region38: #{tpu_custom_call.1} parent=31 // pred_check_branch
          %238 = sbr.rel (%p236) target = $region40
        $region39: #{tpu_custom_call.1} parent=31 // pred_region
          %p239 = scmp.lt.s32.totalorder %s14, 2
          %s240 = scalar_select %p239, %s14, 2
          %s241 = smul.addr %s240, 4
          %s242 = smul.addr %s241, 8
          %s243 = scalar_lea.vmem %s5, %s242
        $region40: #{tpu_custom_call.1} parent=31 // pred_fallthru
          _
        // Predicated region
        $region41: #{tpu_custom_call.1} parent=31 // pred_check
          %p244 = pneg %p170
        $region42: #{tpu_custom_call.1} parent=31 // pred_check_branch
          %246 = sbr.rel (%p244) target = $region44
        $region43: #{tpu_custom_call.1} parent=31 // pred_region
          %p247 = scmp.lt.s32.totalorder %s14, 2
          %s248 = scalar_select %p247, %s14, 2
          %s249 = scalar_lea.vmem %s6, %s248
        $region44: #{tpu_custom_call.1} parent=31 // pred_fallthru
          _
      $region32: #{tpu_custom_call.1} parent=5 // pred_fallthru
        _
      %p250 = scmp.le.s32.totalorder 1, %s14
      %p251 = scmp.lt.s32.totalorder %s14, 4
      %p252 = pnand %p250, %p251
      %p253 = pneg %p252
      // Predicated region
      $region45: #{tpu_custom_call.1} parent=5 // pred_check
        _
      $region46: #{tpu_custom_call.1} parent=5 // pred_check_branch
        %255 = sbr.rel (%p252) target = $region48
      $region47: #{tpu_custom_call.1} parent=5 // pred_region
        %s256 = ssub.s32 %s14, 1
        %p257 = pneg %p35
        %p258 = pneg %p32
        %p259 = pneg %p56
        %p260 = pneg %p53
        %p261 = pneg %p77
        %p262 = pneg %p74
        %p263 = pneg %p98
        %p264 = pneg %p95
        %p265 = scmp.lt.s32.totalorder %s19, 2
        %s266 = scalar_select %p265, %s19, 2
        %s267 = smul.addr %s266, 128
        %s268 = smul.addr %s267, 8
        %s269 = scalar_lea.vmem %s4, %s268
        %p270 = pneg %p124
        %p271 = pneg %p121
        %p272 = scmp.lt.s32.totalorder %s19, 2
        %s273 = scalar_select %p272, %s19, 2
        %s274 = smul.addr %s273, 4
        %s275 = smul.addr %s274, 8
        %s276 = scalar_lea.vmem %s5, %s275
        %p277 = pneg %p150
        %p278 = pneg %p147
        %p279 = scmp.lt.s32.totalorder %s19, 2
        %s280 = scalar_select %p279, %s19, 2
        %s281 = scalar_lea.vmem %s6, %s280
        %p282 = pneg %p176
        %p283 = pneg %p173
        %p284 = pneg %p197
        %p285 = pneg %p194
        %p286 = scmp.lt.s32.totalorder %s19, 2
        %s287 = scalar_select %p286, %s19, 2
        %s288 = smul.addr %s287, 128
        %s289 = smul.addr %s288, 8
        %s290 = scalar_lea.vmem %s4, %s289
        %p291 = scmp.lt.s32.totalorder %s19, 2
        %s292 = scalar_select %p291, %s19, 2
        %s293 = smul.addr %s292, 4
        %s294 = smul.addr %s293, 8
        %s295 = scalar_lea.vmem %s5, %s294
        %p296 = scmp.lt.s32.totalorder %s19, 2
        %s297 = scalar_select %p296, %s19, 2
        %s298 = scalar_lea.vmem %s6, %s297
        %p299 = scmp.eq.s32.totalorder %s19, 0
        // Predicated region
        $region49: #{tpu_custom_call.1} parent=47 // pred_check
          %p300 = pneg %p299
        $region50: #{tpu_custom_call.1} parent=47 // pred_check_branch
          %302 = sbr.rel (%p300) target = $region52
        $region51: #{tpu_custom_call.1} parent=47 // pred_region
          %v303 = vld [vmem:[%s0] sm:$0xff]
          %v304 = vld [vmem:[%s0 + $0x8] sm:$0xff]
          %v305 = vld [vmem:[%s0 + $0x10] sm:$0xff]
          %v306 = vld [vmem:[%s0 + $0x18] sm:$0xff]
          %v307 = vld [vmem:[%s0 + $0x20] sm:$0xff]
          %v308 = vld [vmem:[%s0 + $0x28] sm:$0xff]
          %v309 = vld [vmem:[%s0 + $0x30] sm:$0xff]
          %v310 = vld [vmem:[%s0 + $0x38] sm:$0xff]
          %v311 = vld [vmem:[%s1] sm:$0xff]
          %v312 = vld [vmem:[%s1 + $0x8] sm:$0xff]
          %v313 = vld [vmem:[%s1 + $0x10] sm:$0xff]
          %v314 = vld [vmem:[%s1 + $0x18] sm:$0xff]
          %v315 = vld [vmem:[%s1 + $0x20] sm:$0xff]
          %v316 = vld [vmem:[%s1 + $0x28] sm:$0xff]
          %v317 = vld [vmem:[%s1 + $0x30] sm:$0xff]
          %v318 = vld [vmem:[%s1 + $0x38] sm:$0xff]
          %v319 = vld [vmem:[%s1 + $0x40] sm:$0xff]
          %v320 = vld [vmem:[%s1 + $0x48] sm:$0xff]
          %v321 = vld [vmem:[%s1 + $0x50] sm:$0xff]
          %v322 = vld [vmem:[%s1 + $0x58] sm:$0xff]
          %v323 = vld [vmem:[%s1 + $0x60] sm:$0xff]
          %v324 = vld [vmem:[%s1 + $0x68] sm:$0xff]
          %v325 = vld [vmem:[%s1 + $0x70] sm:$0xff]
          %v326 = vld [vmem:[%s1 + $0x78] sm:$0xff]
          %v327 = vld [vmem:[%s1 + $0x80] sm:$0xff]
          %v328 = vld [vmem:[%s1 + $0x88] sm:$0xff]
          %v329 = vld [vmem:[%s1 + $0x90] sm:$0xff]
          %v330 = vld [vmem:[%s1 + $0x98] sm:$0xff]
          %v331 = vld [vmem:[%s1 + $0xa0] sm:$0xff]
          %v332 = vld [vmem:[%s1 + $0xa8] sm:$0xff]
          %v333 = vld [vmem:[%s1 + $0xb0] sm:$0xff]
          %v334 = vld [vmem:[%s1 + $0xb8] sm:$0xff]
          %v335 = vld [vmem:[%s1 + $0xc0] sm:$0xff]
          %v336 = vld [vmem:[%s1 + $0xc8] sm:$0xff]
          %v337 = vld [vmem:[%s1 + $0xd0] sm:$0xff]
          %v338 = vld [vmem:[%s1 + $0xd8] sm:$0xff]
          %v339 = vld [vmem:[%s1 + $0xe0] sm:$0xff]
          %v340 = vld [vmem:[%s1 + $0xe8] sm:$0xff]
          %v341 = vld [vmem:[%s1 + $0xf0] sm:$0xff]
          %v342 = vld [vmem:[%s1 + $0xf8] sm:$0xff]
          %v343 = vld [vmem:[%s1 + $0x100] sm:$0xff]
          %v344 = vld [vmem:[%s1 + $0x108] sm:$0xff]
          %v345 = vld [vmem:[%s1 + $0x110] sm:$0xff]
          %v346 = vld [vmem:[%s1 + $0x118] sm:$0xff]
          %v347 = vld [vmem:[%s1 + $0x120] sm:$0xff]
          %v348 = vld [vmem:[%s1 + $0x128] sm:$0xff]
          %v349 = vld [vmem:[%s1 + $0x130] sm:$0xff]
          %v350 = vld [vmem:[%s1 + $0x138] sm:$0xff]
          %v351 = vld [vmem:[%s1 + $0x140] sm:$0xff]
          %v352 = vld [vmem:[%s1 + $0x148] sm:$0xff]
          %v353 = vld [vmem:[%s1 + $0x150] sm:$0xff]
          %v354 = vld [vmem:[%s1 + $0x158] sm:$0xff]
          %v355 = vld [vmem:[%s1 + $0x160] sm:$0xff]
          %v356 = vld [vmem:[%s1 + $0x168] sm:$0xff]
          %v357 = vld [vmem:[%s1 + $0x170] sm:$0xff]
          %v358 = vld [vmem:[%s1 + $0x178] sm:$0xff]
          %v359 = vld [vmem:[%s1 + $0x180] sm:$0xff]
          %v360 = vld [vmem:[%s1 + $0x188] sm:$0xff]
          %v361 = vld [vmem:[%s1 + $0x190] sm:$0xff]
          %v362 = vld [vmem:[%s1 + $0x198] sm:$0xff]
          %v363 = vld [vmem:[%s1 + $0x1a0] sm:$0xff]
          %v364 = vld [vmem:[%s1 + $0x1a8] sm:$0xff]
          %v365 = vld [vmem:[%s1 + $0x1b0] sm:$0xff]
          %v366 = vld [vmem:[%s1 + $0x1b8] sm:$0xff]
          %v367 = vld [vmem:[%s1 + $0x1c0] sm:$0xff]
          %v368 = vld [vmem:[%s1 + $0x1c8] sm:$0xff]
          %v369 = vld [vmem:[%s1 + $0x1d0] sm:$0xff]
          %v370 = vld [vmem:[%s1 + $0x1d8] sm:$0xff]
          %v371 = vld [vmem:[%s1 + $0x1e0] sm:$0xff]
          %v372 = vld [vmem:[%s1 + $0x1e8] sm:$0xff]
          %v373 = vld [vmem:[%s1 + $0x1f0] sm:$0xff]
          %v374 = vld [vmem:[%s1 + $0x1f8] sm:$0xff]
          %v375 = vld [vmem:[%s1 + $0x200] sm:$0xff]
          %v376 = vld [vmem:[%s1 + $0x208] sm:$0xff]
          %v377 = vld [vmem:[%s1 + $0x210] sm:$0xff]
          %v378 = vld [vmem:[%s1 + $0x218] sm:$0xff]
          %v379 = vld [vmem:[%s1 + $0x220] sm:$0xff]
          %v380 = vld [vmem:[%s1 + $0x228] sm:$0xff]
          %v381 = vld [vmem:[%s1 + $0x230] sm:$0xff]
          %v382 = vld [vmem:[%s1 + $0x238] sm:$0xff]
          %v383 = vld [vmem:[%s1 + $0x240] sm:$0xff]
          %v384 = vld [vmem:[%s1 + $0x248] sm:$0xff]
          %v385 = vld [vmem:[%s1 + $0x250] sm:$0xff]
          %v386 = vld [vmem:[%s1 + $0x258] sm:$0xff]
          %v387 = vld [vmem:[%s1 + $0x260] sm:$0xff]
          %v388 = vld [vmem:[%s1 + $0x268] sm:$0xff]
          %v389 = vld [vmem:[%s1 + $0x270] sm:$0xff]
          %v390 = vld [vmem:[%s1 + $0x278] sm:$0xff]
          %v391 = vld [vmem:[%s1 + $0x280] sm:$0xff]
          %v392 = vld [vmem:[%s1 + $0x288] sm:$0xff]
          %v393 = vld [vmem:[%s1 + $0x290] sm:$0xff]
          %v394 = vld [vmem:[%s1 + $0x298] sm:$0xff]
          %v395 = vld [vmem:[%s1 + $0x2a0] sm:$0xff]
          %v396 = vld [vmem:[%s1 + $0x2a8] sm:$0xff]
          %v397 = vld [vmem:[%s1 + $0x2b0] sm:$0xff]
          %v398 = vld [vmem:[%s1 + $0x2b8] sm:$0xff]
          %v399 = vld [vmem:[%s1 + $0x2c0] sm:$0xff]
          %v400 = vld [vmem:[%s1 + $0x2c8] sm:$0xff]
          %v401 = vld [vmem:[%s1 + $0x2d0] sm:$0xff]
          %v402 = vld [vmem:[%s1 + $0x2d8] sm:$0xff]
          %v403 = vld [vmem:[%s1 + $0x2e0] sm:$0xff]
          %v404 = vld [vmem:[%s1 + $0x2e8] sm:$0xff]
          %v405 = vld [vmem:[%s1 + $0x2f0] sm:$0xff]
          %v406 = vld [vmem:[%s1 + $0x2f8] sm:$0xff]
          %v407 = vld [vmem:[%s1 + $0x300] sm:$0xff]
          %v408 = vld [vmem:[%s1 + $0x308] sm:$0xff]
          %v409 = vld [vmem:[%s1 + $0x310] sm:$0xff]
          %v410 = vld [vmem:[%s1 + $0x318] sm:$0xff]
          %v411 = vld [vmem:[%s1 + $0x320] sm:$0xff]
          %v412 = vld [vmem:[%s1 + $0x328] sm:$0xff]
          %v413 = vld [vmem:[%s1 + $0x330] sm:$0xff]
          %v414 = vld [vmem:[%s1 + $0x338] sm:$0xff]
          %v415 = vld [vmem:[%s1 + $0x340] sm:$0xff]
          %v416 = vld [vmem:[%s1 + $0x348] sm:$0xff]
          %v417 = vld [vmem:[%s1 + $0x350] sm:$0xff]
          %v418 = vld [vmem:[%s1 + $0x358] sm:$0xff]
          %v419 = vld [vmem:[%s1 + $0x360] sm:$0xff]
          %v420 = vld [vmem:[%s1 + $0x368] sm:$0xff]
          %v421 = vld [vmem:[%s1 + $0x370] sm:$0xff]
          %v422 = vld [vmem:[%s1 + $0x378] sm:$0xff]
          %v423 = vld [vmem:[%s1 + $0x380] sm:$0xff]
          %v424 = vld [vmem:[%s1 + $0x388] sm:$0xff]
          %v425 = vld [vmem:[%s1 + $0x390] sm:$0xff]
          %v426 = vld [vmem:[%s1 + $0x398] sm:$0xff]
          %v427 = vld [vmem:[%s1 + $0x3a0] sm:$0xff]
          %v428 = vld [vmem:[%s1 + $0x3a8] sm:$0xff]
          %v429 = vld [vmem:[%s1 + $0x3b0] sm:$0xff]
          %v430 = vld [vmem:[%s1 + $0x3b8] sm:$0xff]
          %v431 = vld [vmem:[%s1 + $0x3c0] sm:$0xff]
          %v432 = vld [vmem:[%s1 + $0x3c8] sm:$0xff]
          %v433 = vld [vmem:[%s1 + $0x3d0] sm:$0xff]
          %v434 = vld [vmem:[%s1 + $0x3d8] sm:$0xff]
          %v435 = vld [vmem:[%s1 + $0x3e0] sm:$0xff]
          %v436 = vld [vmem:[%s1 + $0x3e8] sm:$0xff]
          %v437 = vld [vmem:[%s1 + $0x3f0] sm:$0xff]
          %v438 = vld [vmem:[%s1 + $0x3f8] sm:$0xff]
          %439 = vmatprep.subr.mxu0 0.0
          %440 = vmatpush1.msra.mxu0 %v311
          %441 = vmatprep.subr.mxu0 0.0
          %442 = vmatpush1.msra.mxu0 %v312
          %443 = vmatprep.subr.mxu0 0.0
          %444 = vmatpush1.msra.mxu0 %v313
          %445 = vmatprep.subr.mxu0 0.0
          %446 = vmatpush1.msra.mxu0 %v314
          %447 = vmatprep.subr.mxu0 0.0
          %448 = vmatpush1.msra.mxu0 %v315
          %449 = vmatprep.subr.mxu0 0.0
          %450 = vmatpush1.msra.mxu0 %v316
          %451 = vmatprep.subr.mxu0 0.0
          %452 = vmatpush1.msra.mxu0 %v317
          %453 = vmatprep.subr.mxu0 0.0
          %454 = vmatpush1.msra.mxu0 %v318
          %455 = vmatprep.subr.mxu0 0.0
          %456 = vmatpush1.msra.mxu0 %v319
          %457 = vmatprep.subr.mxu0 0.0
          %458 = vmatpush1.msra.mxu0 %v320
          %459 = vmatprep.subr.mxu0 0.0
          %460 = vmatpush1.msra.mxu0 %v321
          %461 = vmatprep.subr.mxu0 0.0
          %462 = vmatpush1.msra.mxu0 %v322
          %463 = vmatprep.subr.mxu0 0.0
          %464 = vmatpush1.msra.mxu0 %v323
          %465 = vmatprep.subr.mxu0 0.0
          %466 = vmatpush1.msra.mxu0 %v324
          %467 = vmatprep.subr.mxu0 0.0
          %468 = vmatpush1.msra.mxu0 %v325
          %469 = vmatprep.subr.mxu0 0.0
          %470 = vmatpush1.msra.mxu0 %v326
          %471 = vmatprep.subr.mxu0 0.0
          %472 = vmatpush1.msra.mxu0 %v327
          %473 = vmatprep.subr.mxu0 0.0
          %474 = vmatpush1.msra.mxu0 %v328
          %475 = vmatprep.subr.mxu0 0.0
          %476 = vmatpush1.msra.mxu0 %v329
          %477 = vmatprep.subr.mxu0 0.0
          %478 = vmatpush1.msra.mxu0 %v330
          %479 = vmatprep.subr.mxu0 0.0
          %480 = vmatpush1.msra.mxu0 %v331
          %481 = vmatprep.subr.mxu0 0.0
          %482 = vmatpush1.msra.mxu0 %v332
          %483 = vmatprep.subr.mxu0 0.0
          %484 = vmatpush1.msra.mxu0 %v333
          %485 = vmatprep.subr.mxu0 0.0
          %486 = vmatpush1.msra.mxu0 %v334
          %487 = vmatprep.subr.mxu0 0.0
          %488 = vmatpush1.msra.mxu0 %v335
          %489 = vmatprep.subr.mxu0 0.0
          %490 = vmatpush1.msra.mxu0 %v336
          %491 = vmatprep.subr.mxu0 0.0
          %492 = vmatpush1.msra.mxu0 %v337
          %493 = vmatprep.subr.mxu0 0.0
          %494 = vmatpush1.msra.mxu0 %v338
          %495 = vmatprep.subr.mxu0 0.0
          %496 = vmatpush1.msra.mxu0 %v339
          %497 = vmatprep.subr.mxu0 0.0
          %498 = vmatpush1.msra.mxu0 %v340
          %499 = vmatprep.subr.mxu0 0.0
          %500 = vmatpush1.msra.mxu0 %v341
          %501 = vmatprep.subr.mxu0 0.0
          %502 = vmatpush1.msra.mxu0 %v342
          %503 = vmatprep.mubr.f32.mxu0 %v304
          %504 = vmatmul.mubr.f32.gmra.mrb[0].mxu0 %v303
          %v505 = vpop.f32.mrb[0].mxu0
          %v506 = vadd.f32 0.0, %v505
          %v507 = vpop.f32.mrb[0].mxu0
          %508 = vdwg.mxu0
          %509 = vmatprep.subr.mxu0 0.0
          %510 = vmatpush1.msra.mxu0 %v343
          %511 = vmatprep.subr.mxu0 0.0
          %512 = vmatpush1.msra.mxu0 %v344
          %513 = vmatprep.subr.mxu0 0.0
          %514 = vmatpush1.msra.mxu0 %v345
          %515 = vmatprep.subr.mxu0 0.0
          %516 = vmatpush1.msra.mxu0 %v346
          %517 = vmatprep.subr.mxu0 0.0
          %518 = vmatpush1.msra.mxu0 %v347
          %519 = vmatprep.subr.mxu0 0.0
          %520 = vmatpush1.msra.mxu0 %v348
          %521 = vmatprep.subr.mxu0 0.0
          %522 = vmatpush1.msra.mxu0 %v349
          %523 = vmatprep.subr.mxu0 0.0
          %524 = vmatpush1.msra.mxu0 %v350
          %525 = vmatprep.subr.mxu0 0.0
          %526 = vmatpush1.msra.mxu0 %v351
          %527 = vmatprep.subr.mxu0 0.0
          %528 = vmatpush1.msra.mxu0 %v352
          %529 = vmatprep.subr.mxu0 0.0
          %530 = vmatpush1.msra.mxu0 %v353
          %531 = vmatprep.subr.mxu0 0.0
          %532 = vmatpush1.msra.mxu0 %v354
          %533 = vmatprep.subr.mxu0 0.0
          %534 = vmatpush1.msra.mxu0 %v355
          %535 = vmatprep.subr.mxu0 0.0
          %536 = vmatpush1.msra.mxu0 %v356
          %537 = vmatprep.subr.mxu0 0.0
          %538 = vmatpush1.msra.mxu0 %v357
          %539 = vmatprep.subr.mxu0 0.0
          %540 = vmatpush1.msra.mxu0 %v358
          %541 = vmatprep.subr.mxu0 0.0
          %542 = vmatpush1.msra.mxu0 %v359
          %543 = vmatprep.subr.mxu0 0.0
          %544 = vmatpush1.msra.mxu0 %v360
          %545 = vmatprep.subr.mxu0 0.0
          %546 = vmatpush1.msra.mxu0 %v361
          %547 = vmatprep.subr.mxu0 0.0
          %548 = vmatpush1.msra.mxu0 %v362
          %549 = vmatprep.subr.mxu0 0.0
          %550 = vmatpush1.msra.mxu0 %v363
          %551 = vmatprep.subr.mxu0 0.0
          %552 = vmatpush1.msra.mxu0 %v364
          %553 = vmatprep.subr.mxu0 0.0
          %554 = vmatpush1.msra.mxu0 %v365
          %555 = vmatprep.subr.mxu0 0.0
          %556 = vmatpush1.msra.mxu0 %v366
          %557 = vmatprep.subr.mxu0 0.0
          %558 = vmatpush1.msra.mxu0 %v367
          %559 = vmatprep.subr.mxu0 0.0
          %560 = vmatpush1.msra.mxu0 %v368
          %561 = vmatprep.subr.mxu0 0.0
          %562 = vmatpush1.msra.mxu0 %v369
          %563 = vmatprep.subr.mxu0 0.0
          %564 = vmatpush1.msra.mxu0 %v370
          %565 = vmatprep.subr.mxu0 0.0
          %566 = vmatpush1.msra.mxu0 %v371
          %567 = vmatprep.subr.mxu0 0.0
          %568 = vmatpush1.msra.mxu0 %v372
          %569 = vmatprep.subr.mxu0 0.0
          %570 = vmatpush1.msra.mxu0 %v373
          %571 = vmatprep.subr.mxu0 0.0
          %572 = vmatpush1.msra.mxu0 %v374
          %573 = vmatprep.mubr.f32.mxu0 %v306
          %574 = vmatmul.mubr.f32.gmra.mrb[0].mxu0 %v305
          %v575 = vpop.f32.mrb[0].mxu0
          %v576 = vadd.f32 %v506, %v575
          %v577 = vpop.f32.mrb[0].mxu0
          %578 = vdwg.mxu0
          %579 = vmatprep.subr.mxu0 0.0
          %580 = vmatpush1.msra.mxu0 %v375
          %581 = vmatprep.subr.mxu0 0.0
          %582 = vmatpush1.msra.mxu0 %v376
          %583 = vmatprep.subr.mxu0 0.0
          %584 = vmatpush1.msra.mxu0 %v377
          %585 = vmatprep.subr.mxu0 0.0
          %586 = vmatpush1.msra.mxu0 %v378
          %587 = vmatprep.subr.mxu0 0.0
          %588 = vmatpush1.msra.mxu0 %v379
          %589 = vmatprep.subr.mxu0 0.0
          %590 = vmatpush1.msra.mxu0 %v380
          %591 = vmatprep.subr.mxu0 0.0
          %592 = vmatpush1.msra.mxu0 %v381
          %593 = vmatprep.subr.mxu0 0.0
          %594 = vmatpush1.msra.mxu0 %v382
          %595 = vmatprep.subr.mxu0 0.0
          %596 = vmatpush1.msra.mxu0 %v383
          %597 = vmatprep.subr.mxu0 0.0
          %598 = vmatpush1.msra.mxu0 %v384
          %599 = vmatprep.subr.mxu0 0.0
          %600 = vmatpush1.msra.mxu0 %v385
          %601 = vmatprep.subr.mxu0 0.0
          %602 = vmatpush1.msra.mxu0 %v386
          %603 = vmatprep.subr.mxu0 0.0
          %604 = vmatpush1.msra.mxu0 %v387
          %605 = vmatprep.subr.mxu0 0.0
          %606 = vmatpush1.msra.mxu0 %v388
          %607 = vmatprep.subr.mxu0 0.0
          %608 = vmatpush1.msra.mxu0 %v389
          %609 = vmatprep.subr.mxu0 0.0
          %610 = vmatpush1.msra.mxu0 %v390
          %611 = vmatprep.subr.mxu0 0.0
          %612 = vmatpush1.msra.mxu0 %v391
          %613 = vmatprep.subr.mxu0 0.0
          %614 = vmatpush1.msra.mxu0 %v392
          %615 = vmatprep.subr.mxu0 0.0
          %616 = vmatpush1.msra.mxu0 %v393
          %617 = vmatprep.subr.mxu0 0.0
          %618 = vmatpush1.msra.mxu0 %v394
          %619 = vmatprep.subr.mxu0 0.0
          %620 = vmatpush1.msra.mxu0 %v395
          %621 = vmatprep.subr.mxu0 0.0
          %622 = vmatpush1.msra.mxu0 %v396
          %623 = vmatprep.subr.mxu0 0.0
          %624 = vmatpush1.msra.mxu0 %v397
          %625 = vmatprep.subr.mxu0 0.0
          %626 = vmatpush1.msra.mxu0 %v398
          %627 = vmatprep.subr.mxu0 0.0
          %628 = vmatpush1.msra.mxu0 %v399
          %629 = vmatprep.subr.mxu0 0.0
          %630 = vmatpush1.msra.mxu0 %v400
          %631 = vmatprep.subr.mxu0 0.0
          %632 = vmatpush1.msra.mxu0 %v401
          %633 = vmatprep.subr.mxu0 0.0
          %634 = vmatpush1.msra.mxu0 %v402
          %635 = vmatprep.subr.mxu0 0.0
          %636 = vmatpush1.msra.mxu0 %v403
          %637 = vmatprep.subr.mxu0 0.0
          %638 = vmatpush1.msra.mxu0 %v404
          %639 = vmatprep.subr.mxu0 0.0
          %640 = vmatpush1.msra.mxu0 %v405
          %641 = vmatprep.subr.mxu0 0.0
          %642 = vmatpush1.msra.mxu0 %v406
          %643 = vmatprep.mubr.f32.mxu0 %v308
          %644 = vmatmul.mubr.f32.gmra.mrb[0].mxu0 %v307
          %v645 = vpop.f32.mrb[0].mxu0
          %v646 = vadd.f32 %v576, %v645
          %v647 = vpop.f32.mrb[0].mxu0
          %648 = vdwg.mxu0
          %649 = vmatprep.subr.mxu0 0.0
          %650 = vmatpush1.msra.mxu0 %v407
          %651 = vmatprep.subr.mxu0 0.0
          %652 = vmatpush1.msra.mxu0 %v408
          %653 = vmatprep.subr.mxu0 0.0
          %654 = vmatpush1.msra.mxu0 %v409
          %655 = vmatprep.subr.mxu0 0.0
          %656 = vmatpush1.msra.mxu0 %v410
          %657 = vmatprep.subr.mxu0 0.0
          %658 = vmatpush1.msra.mxu0 %v411
          %659 = vmatprep.subr.mxu0 0.0
          %660 = vmatpush1.msra.mxu0 %v412
          %661 = vmatprep.subr.mxu0 0.0
          %662 = vmatpush1.msra.mxu0 %v413
          %663 = vmatprep.subr.mxu0 0.0
          %664 = vmatpush1.msra.mxu0 %v414
          %665 = vmatprep.subr.mxu0 0.0
          %666 = vmatpush1.msra.mxu0 %v415
          %667 = vmatprep.subr.mxu0 0.0
          %668 = vmatpush1.msra.mxu0 %v416
          %669 = vmatprep.subr.mxu0 0.0
          %670 = vmatpush1.msra.mxu0 %v417
          %671 = vmatprep.subr.mxu0 0.0
          %672 = vmatpush1.msra.mxu0 %v418
          %673 = vmatprep.subr.mxu0 0.0
          %674 = vmatpush1.msra.mxu0 %v419
          %675 = vmatprep.subr.mxu0 0.0
          %676 = vmatpush1.msra.mxu0 %v420
          %677 = vmatprep.subr.mxu0 0.0
          %678 = vmatpush1.msra.mxu0 %v421
          %679 = vmatprep.subr.mxu0 0.0
          %680 = vmatpush1.msra.mxu0 %v422
          %681 = vmatprep.subr.mxu0 0.0
          %682 = vmatpush1.msra.mxu0 %v423
          %683 = vmatprep.subr.mxu0 0.0
          %684 = vmatpush1.msra.mxu0 %v424
          %685 = vmatprep.subr.mxu0 0.0
          %686 = vmatpush1.msra.mxu0 %v425
          %687 = vmatprep.subr.mxu0 0.0
          %688 = vmatpush1.msra.mxu0 %v426
          %689 = vmatprep.subr.mxu0 0.0
          %690 = vmatpush1.msra.mxu0 %v427
          %691 = vmatprep.subr.mxu0 0.0
          %692 = vmatpush1.msra.mxu0 %v428
          %693 = vmatprep.subr.mxu0 0.0
          %694 = vmatpush1.msra.mxu0 %v429
          %695 = vmatprep.subr.mxu0 0.0
          %696 = vmatpush1.msra.mxu0 %v430
          %697 = vmatprep.subr.mxu0 0.0
          %698 = vmatpush1.msra.mxu0 %v431
          %699 = vmatprep.subr.mxu0 0.0
          %700 = vmatpush1.msra.mxu0 %v432
          %701 = vmatprep.subr.mxu0 0.0
          %702 = vmatpush1.msra.mxu0 %v433
          %703 = vmatprep.subr.mxu0 0.0
          %704 = vmatpush1.msra.mxu0 %v434
          %705 = vmatprep.subr.mxu0 0.0
          %706 = vmatpush1.msra.mxu0 %v435
          %707 = vmatprep.subr.mxu0 0.0
          %708 = vmatpush1.msra.mxu0 %v436
          %709 = vmatprep.subr.mxu0 0.0
          %710 = vmatpush1.msra.mxu0 %v437
          %711 = vmatprep.subr.mxu0 0.0
          %712 = vmatpush1.msra.mxu0 %v438
          %713 = vmatprep.mubr.f32.mxu0 %v310
          %714 = vmatmul.mubr.f32.gmra.mrb[0].mxu0 %v309
          %v715 = vpop.f32.mrb[0].mxu0
          %v716 = vadd.f32 %v646, %v715
          %v717 = vpop.f32.mrb[0].mxu0
          %718 = vdwg.mxu0
          %vm719 = vcmask 261120
          %720 = vst.msk [vmem:[#allocation2] sm:$0xff] %vm719, %v716
        $region52: #{tpu_custom_call.1} parent=47 // pred_fallthru
          _
        %v721 = vld [vmem:[#allocation2] sm:$0xff]
        %v722 = vld [vmem:[%s2] sm:$0xff]
        %v723 = vld [vmem:[%s2 + $0x8] sm:$0xff]
        %v724 = vld [vmem:[%s2 + $0x10] sm:$0xff]
        %v725 = vld [vmem:[%s2 + $0x18] sm:$0xff]
        %v726 = vld [vmem:[%s2 + $0x20] sm:$0xff]
        %v727 = vld [vmem:[%s2 + $0x28] sm:$0xff]
        %v728 = vld [vmem:[%s2 + $0x30] sm:$0xff]
        %v729 = vld [vmem:[%s2 + $0x38] sm:$0xff]
        %v730 = vld [vmem:[%s290] sm:$0xff]
        %v731 = vld [vmem:[%s290 + $0x8] sm:$0xff]
        %v732 = vld [vmem:[%s290 + $0x10] sm:$0xff]
        %v733 = vld [vmem:[%s290 + $0x18] sm:$0xff]
        %v734 = vld [vmem:[%s290 + $0x20] sm:$0xff]
        %v735 = vld [vmem:[%s290 + $0x28] sm:$0xff]
        %v736 = vld [vmem:[%s290 + $0x30] sm:$0xff]
        %v737 = vld [vmem:[%s290 + $0x38] sm:$0xff]
        %v738 = vld [vmem:[%s290 + $0x40] sm:$0xff]
        %v739 = vld [vmem:[%s290 + $0x48] sm:$0xff]
        %v740 = vld [vmem:[%s290 + $0x50] sm:$0xff]
        %v741 = vld [vmem:[%s290 + $0x58] sm:$0xff]
        %v742 = vld [vmem:[%s290 + $0x60] sm:$0xff]
        %v743 = vld [vmem:[%s290 + $0x68] sm:$0xff]
        %v744 = vld [vmem:[%s290 + $0x70] sm:$0xff]
        %v745 = vld [vmem:[%s290 + $0x78] sm:$0xff]
        %v746 = vld [vmem:[%s290 + $0x80] sm:$0xff]
        %v747 = vld [vmem:[%s290 + $0x88] sm:$0xff]
        %v748 = vld [vmem:[%s290 + $0x90] sm:$0xff]
        %v749 = vld [vmem:[%s290 + $0x98] sm:$0xff]
        %v750 = vld [vmem:[%s290 + $0xa0] sm:$0xff]
        %v751 = vld [vmem:[%s290 + $0xa8] sm:$0xff]
        %v752 = vld [vmem:[%s290 + $0xb0] sm:$0xff]
        %v753 = vld [vmem:[%s290 + $0xb8] sm:$0xff]
        %v754 = vld [vmem:[%s290 + $0xc0] sm:$0xff]
        %v755 = vld [vmem:[%s290 + $0xc8] sm:$0xff]
        %v756 = vld [vmem:[%s290 + $0xd0] sm:$0xff]
        %v757 = vld [vmem:[%s290 + $0xd8] sm:$0xff]
        %v758 = vld [vmem:[%s290 + $0xe0] sm:$0xff]
        %v759 = vld [vmem:[%s290 + $0xe8] sm:$0xff]
        %v760 = vld [vmem:[%s290 + $0xf0] sm:$0xff]
        %v761 = vld [vmem:[%s290 + $0xf8] sm:$0xff]
        %v762 = vld [vmem:[%s290 + $0x100] sm:$0xff]
        %v763 = vld [vmem:[%s290 + $0x108] sm:$0xff]
        %v764 = vld [vmem:[%s290 + $0x110] sm:$0xff]
        %v765 = vld [vmem:[%s290 + $0x118] sm:$0xff]
        %v766 = vld [vmem:[%s290 + $0x120] sm:$0xff]
        %v767 = vld [vmem:[%s290 + $0x128] sm:$0xff]
        %v768 = vld [vmem:[%s290 + $0x130] sm:$0xff]
        %v769 = vld [vmem:[%s290 + $0x138] sm:$0xff]
        %v770 = vld [vmem:[%s290 + $0x140] sm:$0xff]
        %v771 = vld [vmem:[%s290 + $0x148] sm:$0xff]
        %v772 = vld [vmem:[%s290 + $0x150] sm:$0xff]
        %v773 = vld [vmem:[%s290 + $0x158] sm:$0xff]
        %v774 = vld [vmem:[%s290 + $0x160] sm:$0xff]
        %v775 = vld [vmem:[%s290 + $0x168] sm:$0xff]
        %v776 = vld [vmem:[%s290 + $0x170] sm:$0xff]
        %v777 = vld [vmem:[%s290 + $0x178] sm:$0xff]
        %v778 = vld [vmem:[%s290 + $0x180] sm:$0xff]
        %v779 = vld [vmem:[%s290 + $0x188] sm:$0xff]
        %v780 = vld [vmem:[%s290 + $0x190] sm:$0xff]
        %v781 = vld [vmem:[%s290 + $0x198] sm:$0xff]
        %v782 = vld [vmem:[%s290 + $0x1a0] sm:$0xff]
        %v783 = vld [vmem:[%s290 + $0x1a8] sm:$0xff]
        %v784 = vld [vmem:[%s290 + $0x1b0] sm:$0xff]
        %v785 = vld [vmem:[%s290 + $0x1b8] sm:$0xff]
        %v786 = vld [vmem:[%s290 + $0x1c0] sm:$0xff]
        %v787 = vld [vmem:[%s290 + $0x1c8] sm:$0xff]
        %v788 = vld [vmem:[%s290 + $0x1d0] sm:$0xff]
        %v789 = vld [vmem:[%s290 + $0x1d8] sm:$0xff]
        %v790 = vld [vmem:[%s290 + $0x1e0] sm:$0xff]
        %v791 = vld [vmem:[%s290 + $0x1e8] sm:$0xff]
        %v792 = vld [vmem:[%s290 + $0x1f0] sm:$0xff]
        %v793 = vld [vmem:[%s290 + $0x1f8] sm:$0xff]
        %v794 = vld [vmem:[%s290 + $0x200] sm:$0xff]
        %v795 = vld [vmem:[%s290 + $0x208] sm:$0xff]
        %v796 = vld [vmem:[%s290 + $0x210] sm:$0xff]
        %v797 = vld [vmem:[%s290 + $0x218] sm:$0xff]
        %v798 = vld [vmem:[%s290 + $0x220] sm:$0xff]
        %v799 = vld [vmem:[%s290 + $0x228] sm:$0xff]
        %v800 = vld [vmem:[%s290 + $0x230] sm:$0xff]
        %v801 = vld [vmem:[%s290 + $0x238] sm:$0xff]
        %v802 = vld [vmem:[%s290 + $0x240] sm:$0xff]
        %v803 = vld [vmem:[%s290 + $0x248] sm:$0xff]
        %v804 = vld [vmem:[%s290 + $0x250] sm:$0xff]
        %v805 = vld [vmem:[%s290 + $0x258] sm:$0xff]
        %v806 = vld [vmem:[%s290 + $0x260] sm:$0xff]
        %v807 = vld [vmem:[%s290 + $0x268] sm:$0xff]
        %v808 = vld [vmem:[%s290 + $0x270] sm:$0xff]
        %v809 = vld [vmem:[%s290 + $0x278] sm:$0xff]
        %v810 = vld [vmem:[%s290 + $0x280] sm:$0xff]
        %v811 = vld [vmem:[%s290 + $0x288] sm:$0xff]
        %v812 = vld [vmem:[%s290 + $0x290] sm:$0xff]
        %v813 = vld [vmem:[%s290 + $0x298] sm:$0xff]
        %v814 = vld [vmem:[%s290 + $0x2a0] sm:$0xff]
        %v815 = vld [vmem:[%s290 + $0x2a8] sm:$0xff]
        %v816 = vld [vmem:[%s290 + $0x2b0] sm:$0xff]
        %v817 = vld [vmem:[%s290 + $0x2b8] sm:$0xff]
        %v818 = vld [vmem:[%s290 + $0x2c0] sm:$0xff]
        %v819 = vld [vmem:[%s290 + $0x2c8] sm:$0xff]
        %v820 = vld [vmem:[%s290 + $0x2d0] sm:$0xff]
        %v821 = vld [vmem:[%s290 + $0x2d8] sm:$0xff]
        %v822 = vld [vmem:[%s290 + $0x2e0] sm:$0xff]
        %v823 = vld [vmem:[%s290 + $0x2e8] sm:$0xff]
        %v824 = vld [vmem:[%s290 + $0x2f0] sm:$0xff]
        %v825 = vld [vmem:[%s290 + $0x2f8] sm:$0xff]
        %v826 = vld [vmem:[%s290 + $0x300] sm:$0xff]
        %v827 = vld [vmem:[%s290 + $0x308] sm:$0xff]
        %v828 = vld [vmem:[%s290 + $0x310] sm:$0xff]
        %v829 = vld [vmem:[%s290 + $0x318] sm:$0xff]
        %v830 = vld [vmem:[%s290 + $0x320] sm:$0xff]
        %v831 = vld [vmem:[%s290 + $0x328] sm:$0xff]
        %v832 = vld [vmem:[%s290 + $0x330] sm:$0xff]
        %v833 = vld [vmem:[%s290 + $0x338] sm:$0xff]
        %v834 = vld [vmem:[%s290 + $0x340] sm:$0xff]
        %v835 = vld [vmem:[%s290 + $0x348] sm:$0xff]
        %v836 = vld [vmem:[%s290 + $0x350] sm:$0xff]
        %v837 = vld [vmem:[%s290 + $0x358] sm:$0xff]
        %v838 = vld [vmem:[%s290 + $0x360] sm:$0xff]
        %v839 = vld [vmem:[%s290 + $0x368] sm:$0xff]
        %v840 = vld [vmem:[%s290 + $0x370] sm:$0xff]
        %v841 = vld [vmem:[%s290 + $0x378] sm:$0xff]
        %v842 = vld [vmem:[%s290 + $0x380] sm:$0xff]
        %v843 = vld [vmem:[%s290 + $0x388] sm:$0xff]
        %v844 = vld [vmem:[%s290 + $0x390] sm:$0xff]
        %v845 = vld [vmem:[%s290 + $0x398] sm:$0xff]
        %v846 = vld [vmem:[%s290 + $0x3a0] sm:$0xff]
        %v847 = vld [vmem:[%s290 + $0x3a8] sm:$0xff]
        %v848 = vld [vmem:[%s290 + $0x3b0] sm:$0xff]
        %v849 = vld [vmem:[%s290 + $0x3b8] sm:$0xff]
        %v850 = vld [vmem:[%s290 + $0x3c0] sm:$0xff]
        %v851 = vld [vmem:[%s290 + $0x3c8] sm:$0xff]
        %v852 = vld [vmem:[%s290 + $0x3d0] sm:$0xff]
        %v853 = vld [vmem:[%s290 + $0x3d8] sm:$0xff]
        %v854 = vld [vmem:[%s290 + $0x3e0] sm:$0xff]
        %v855 = vld [vmem:[%s290 + $0x3e8] sm:$0xff]
        %v856 = vld [vmem:[%s290 + $0x3f0] sm:$0xff]
        %v857 = vld [vmem:[%s290 + $0x3f8] sm:$0xff]
        %v858 = vld [vmem:[%s3] sm:$0x1]
        %v860 = vlaneseq
        %v861 = vshrl.u32 %v860, 7
        %v862 = vsub.s32 0, %v861
        %v863 = vrot.slane %v858, %v862
        %865 = vmatprep.subr.mxu0 0.0
        %866 = vmatpush1.msra.mxu0 %v730
        %867 = vmatprep.subr.mxu0 0.0
        %868 = vmatpush1.msra.mxu0 %v731
        %869 = vmatprep.subr.mxu0 0.0
        %870 = vmatpush1.msra.mxu0 %v732
        %871 = vmatprep.subr.mxu0 0.0
        %872 = vmatpush1.msra.mxu0 %v733
        %873 = vmatprep.subr.mxu0 0.0
        %874 = vmatpush1.msra.mxu0 %v734
        %875 = vmatprep.subr.mxu0 0.0
        %876 = vmatpush1.msra.mxu0 %v735
        %877 = vmatprep.subr.mxu0 0.0
        %878 = vmatpush1.msra.mxu0 %v736
        %879 = vmatprep.subr.mxu0 0.0
        %880 = vmatpush1.msra.mxu0 %v737
        %881 = vmatprep.subr.mxu0 0.0
        %882 = vmatpush1.msra.mxu0 %v738
        %883 = vmatprep.subr.mxu0 0.0
        %884 = vmatpush1.msra.mxu0 %v739
        %885 = vmatprep.subr.mxu0 0.0
        %886 = vmatpush1.msra.mxu0 %v740
        %887 = vmatprep.subr.mxu0 0.0
        %888 = vmatpush1.msra.mxu0 %v741
        %889 = vmatprep.subr.mxu0 0.0
        %890 = vmatpush1.msra.mxu0 %v742
        %891 = vmatprep.subr.mxu0 0.0
        %892 = vmatpush1.msra.mxu0 %v743
        %893 = vmatprep.subr.mxu0 0.0
        %894 = vmatpush1.msra.mxu0 %v744
        %895 = vmatprep.subr.mxu0 0.0
        %896 = vmatpush1.msra.mxu0 %v745
        %897 = vmatprep.subr.mxu0 0.0
        %898 = vmatpush1.msra.mxu0 %v746
        %899 = vmatprep.subr.mxu0 0.0
        %900 = vmatpush1.msra.mxu0 %v747
        %901 = vmatprep.subr.mxu0 0.0
        %902 = vmatpush1.msra.mxu0 %v748
        %903 = vmatprep.subr.mxu0 0.0
        %904 = vmatpush1.msra.mxu0 %v749
        %905 = vmatprep.subr.mxu0 0.0
        %906 = vmatpush1.msra.mxu0 %v750
        %907 = vmatprep.subr.mxu0 0.0
        %908 = vmatpush1.msra.mxu0 %v751
        %909 = vmatprep.subr.mxu0 0.0
        %910 = vmatpush1.msra.mxu0 %v752
        %911 = vmatprep.subr.mxu0 0.0
        %912 = vmatpush1.msra.mxu0 %v753
        %913 = vmatprep.subr.mxu0 0.0
        %914 = vmatpush1.msra.mxu0 %v754
        %915 = vmatprep.subr.mxu0 0.0
        %916 = vmatpush1.msra.mxu0 %v755
        %917 = vmatprep.subr.mxu0 0.0
        %918 = vmatpush1.msra.mxu0 %v756
        %919 = vmatprep.subr.mxu0 0.0
        %920 = vmatpush1.msra.mxu0 %v757
        %921 = vmatprep.subr.mxu0 0.0
        %922 = vmatpush1.msra.mxu0 %v758
        %923 = vmatprep.subr.mxu0 0.0
        %924 = vmatpush1.msra.mxu0 %v759
        %925 = vmatprep.subr.mxu0 0.0
        %926 = vmatpush1.msra.mxu0 %v760
        %927 = vmatprep.subr.mxu0 0.0
        %928 = vmatpush1.msra.mxu0 %v761
        %929 = vmatprep.mubr.f32.mxu0 %v723
        %930 = vmatmul.mubr.f32.gmra.mrb[0].mxu0 %v722
        %v931 = vpop.f32.mrb[0].mxu0
        %v932 = vadd.f32 %v863, %v931
        %v933 = vpop.f32.mrb[0].mxu0
        %934 = vdwg.mxu0
        %935 = vmatprep.subr.mxu0 0.0
        %936 = vmatpush1.msra.mxu0 %v762
        %937 = vmatprep.subr.mxu0 0.0
        %938 = vmatpush1.msra.mxu0 %v763
        %939 = vmatprep.subr.mxu0 0.0
        %940 = vmatpush1.msra.mxu0 %v764
        %941 = vmatprep.subr.mxu0 0.0
        %942 = vmatpush1.msra.mxu0 %v765
        %943 = vmatprep.subr.mxu0 0.0
        %944 = vmatpush1.msra.mxu0 %v766
        %945 = vmatprep.subr.mxu0 0.0
        %946 = vmatpush1.msra.mxu0 %v767
        %947 = vmatprep.subr.mxu0 0.0
        %948 = vmatpush1.msra.mxu0 %v768
        %949 = vmatprep.subr.mxu0 0.0
        %950 = vmatpush1.msra.mxu0 %v769
        %951 = vmatprep.subr.mxu0 0.0
        %952 = vmatpush1.msra.mxu0 %v770
        %953 = vmatprep.subr.mxu0 0.0
        %954 = vmatpush1.msra.mxu0 %v771
        %955 = vmatprep.subr.mxu0 0.0
        %956 = vmatpush1.msra.mxu0 %v772
        %957 = vmatprep.subr.mxu0 0.0
        %958 = vmatpush1.msra.mxu0 %v773
        %959 = vmatprep.subr.mxu0 0.0
        %960 = vmatpush1.msra.mxu0 %v774
        %961 = vmatprep.subr.mxu0 0.0
        %962 = vmatpush1.msra.mxu0 %v775
        %963 = vmatprep.subr.mxu0 0.0
        %964 = vmatpush1.msra.mxu0 %v776
        %965 = vmatprep.subr.mxu0 0.0
        %966 = vmatpush1.msra.mxu0 %v777
        %967 = vmatprep.subr.mxu0 0.0
        %968 = vmatpush1.msra.mxu0 %v778
        %969 = vmatprep.subr.mxu0 0.0
        %970 = vmatpush1.msra.mxu0 %v779
        %971 = vmatprep.subr.mxu0 0.0
        %972 = vmatpush1.msra.mxu0 %v780
        %973 = vmatprep.subr.mxu0 0.0
        %974 = vmatpush1.msra.mxu0 %v781
        %975 = vmatprep.subr.mxu0 0.0
        %976 = vmatpush1.msra.mxu0 %v782
        %977 = vmatprep.subr.mxu0 0.0
        %978 = vmatpush1.msra.mxu0 %v783
        %979 = vmatprep.subr.mxu0 0.0
        %980 = vmatpush1.msra.mxu0 %v784
        %981 = vmatprep.subr.mxu0 0.0
        %982 = vmatpush1.msra.mxu0 %v785
        %983 = vmatprep.subr.mxu0 0.0
        %984 = vmatpush1.msra.mxu0 %v786
        %985 = vmatprep.subr.mxu0 0.0
        %986 = vmatpush1.msra.mxu0 %v787
        %987 = vmatprep.subr.mxu0 0.0
        %988 = vmatpush1.msra.mxu0 %v788
        %989 = vmatprep.subr.mxu0 0.0
        %990 = vmatpush1.msra.mxu0 %v789
        %991 = vmatprep.subr.mxu0 0.0
        %992 = vmatpush1.msra.mxu0 %v790
        %993 = vmatprep.subr.mxu0 0.0
        %994 = vmatpush1.msra.mxu0 %v791
        %995 = vmatprep.subr.mxu0 0.0
        %996 = vmatpush1.msra.mxu0 %v792
        %997 = vmatprep.subr.mxu0 0.0
        %998 = vmatpush1.msra.mxu0 %v793
        %999 = vmatprep.mubr.f32.mxu0 %v725
        %1000 = vmatmul.mubr.f32.gmra.mrb[0].mxu0 %v724
        %v1001 = vpop.f32.mrb[0].mxu0
        %v1002 = vadd.f32 %v932, %v1001
        %v1003 = vpop.f32.mrb[0].mxu0
        %1004 = vdwg.mxu0
        %1005 = vmatprep.subr.mxu0 0.0
        %1006 = vmatpush1.msra.mxu0 %v794
        %1007 = vmatprep.subr.mxu0 0.0
        %1008 = vmatpush1.msra.mxu0 %v795
        %1009 = vmatprep.subr.mxu0 0.0
        %1010 = vmatpush1.msra.mxu0 %v796
        %1011 = vmatprep.subr.mxu0 0.0
        %1012 = vmatpush1.msra.mxu0 %v797
        %1013 = vmatprep.subr.mxu0 0.0
        %1014 = vmatpush1.msra.mxu0 %v798
        %1015 = vmatprep.subr.mxu0 0.0
        %1016 = vmatpush1.msra.mxu0 %v799
        %1017 = vmatprep.subr.mxu0 0.0
        %1018 = vmatpush1.msra.mxu0 %v800
        %1019 = vmatprep.subr.mxu0 0.0
        %1020 = vmatpush1.msra.mxu0 %v801
        %1021 = vmatprep.subr.mxu0 0.0
        %1022 = vmatpush1.msra.mxu0 %v802
        %1023 = vmatprep.subr.mxu0 0.0
        %1024 = vmatpush1.msra.mxu0 %v803
        %1025 = vmatprep.subr.mxu0 0.0
        %1026 = vmatpush1.msra.mxu0 %v804
        %1027 = vmatprep.subr.mxu0 0.0
        %1028 = vmatpush1.msra.mxu0 %v805
        %1029 = vmatprep.subr.mxu0 0.0
        %1030 = vmatpush1.msra.mxu0 %v806
        %1031 = vmatprep.subr.mxu0 0.0
        %1032 = vmatpush1.msra.mxu0 %v807
        %1033 = vmatprep.subr.mxu0 0.0
        %1034 = vmatpush1.msra.mxu0 %v808
        %1035 = vmatprep.subr.mxu0 0.0
        %1036 = vmatpush1.msra.mxu0 %v809
        %1037 = vmatprep.subr.mxu0 0.0
        %1038 = vmatpush1.msra.mxu0 %v810
        %1039 = vmatprep.subr.mxu0 0.0
        %1040 = vmatpush1.msra.mxu0 %v811
        %1041 = vmatprep.subr.mxu0 0.0
        %1042 = vmatpush1.msra.mxu0 %v812
        %1043 = vmatprep.subr.mxu0 0.0
        %1044 = vmatpush1.msra.mxu0 %v813
        %1045 = vmatprep.subr.mxu0 0.0
        %1046 = vmatpush1.msra.mxu0 %v814
        %1047 = vmatprep.subr.mxu0 0.0
        %1048 = vmatpush1.msra.mxu0 %v815
        %1049 = vmatprep.subr.mxu0 0.0
        %1050 = vmatpush1.msra.mxu0 %v816
        %1051 = vmatprep.subr.mxu0 0.0
        %1052 = vmatpush1.msra.mxu0 %v817
        %1053 = vmatprep.subr.mxu0 0.0
        %1054 = vmatpush1.msra.mxu0 %v818
        %1055 = vmatprep.subr.mxu0 0.0
        %1056 = vmatpush1.msra.mxu0 %v819
        %1057 = vmatprep.subr.mxu0 0.0
        %1058 = vmatpush1.msra.mxu0 %v820
        %1059 = vmatprep.subr.mxu0 0.0
        %1060 = vmatpush1.msra.mxu0 %v821
        %1061 = vmatprep.subr.mxu0 0.0
        %1062 = vmatpush1.msra.mxu0 %v822
        %1063 = vmatprep.subr.mxu0 0.0
        %1064 = vmatpush1.msra.mxu0 %v823
        %1065 = vmatprep.subr.mxu0 0.0
        %1066 = vmatpush1.msra.mxu0 %v824
        %1067 = vmatprep.subr.mxu0 0.0
        %1068 = vmatpush1.msra.mxu0 %v825
        %1069 = vmatprep.mubr.f32.mxu0 %v727
        %1070 = vmatmul.mubr.f32.gmra.mrb[0].mxu0 %v726
        %v1071 = vpop.f32.mrb[0].mxu0
        %v1072 = vadd.f32 %v1002, %v1071
        %v1073 = vpop.f32.mrb[0].mxu0
        %1074 = vdwg.mxu0
        %1075 = vmatprep.subr.mxu0 0.0
        %1076 = vmatpush1.msra.mxu0 %v826
        %1077 = vmatprep.subr.mxu0 0.0
        %1078 = vmatpush1.msra.mxu0 %v827
        %1079 = vmatprep.subr.mxu0 0.0
        %1080 = vmatpush1.msra.mxu0 %v828
        %1081 = vmatprep.subr.mxu0 0.0
        %1082 = vmatpush1.msra.mxu0 %v829
        %1083 = vmatprep.subr.mxu0 0.0
        %1084 = vmatpush1.msra.mxu0 %v830
        %1085 = vmatprep.subr.mxu0 0.0
        %1086 = vmatpush1.msra.mxu0 %v831
        %1087 = vmatprep.subr.mxu0 0.0
        %1088 = vmatpush1.msra.mxu0 %v832
        %1089 = vmatprep.subr.mxu0 0.0
        %1090 = vmatpush1.msra.mxu0 %v833
        %1091 = vmatprep.subr.mxu0 0.0
        %1092 = vmatpush1.msra.mxu0 %v834
        %1093 = vmatprep.subr.mxu0 0.0
        %1094 = vmatpush1.msra.mxu0 %v835
        %1095 = vmatprep.subr.mxu0 0.0
        %1096 = vmatpush1.msra.mxu0 %v836
        %1097 = vmatprep.subr.mxu0 0.0
        %1098 = vmatpush1.msra.mxu0 %v837
        %1099 = vmatprep.subr.mxu0 0.0
        %1100 = vmatpush1.msra.mxu0 %v838
        %1101 = vmatprep.subr.mxu0 0.0
        %1102 = vmatpush1.msra.mxu0 %v839
        %1103 = vmatprep.subr.mxu0 0.0
        %1104 = vmatpush1.msra.mxu0 %v840
        %1105 = vmatprep.subr.mxu0 0.0
        %1106 = vmatpush1.msra.mxu0 %v841
        %1107 = vmatprep.subr.mxu0 0.0
        %1108 = vmatpush1.msra.mxu0 %v842
        %1109 = vmatprep.subr.mxu0 0.0
        %1110 = vmatpush1.msra.mxu0 %v843
        %1111 = vmatprep.subr.mxu0 0.0
        %1112 = vmatpush1.msra.mxu0 %v844
        %1113 = vmatprep.subr.mxu0 0.0
        %1114 = vmatpush1.msra.mxu0 %v845
        %1115 = vmatprep.subr.mxu0 0.0
        %1116 = vmatpush1.msra.mxu0 %v846
        %1117 = vmatprep.subr.mxu0 0.0
        %1118 = vmatpush1.msra.mxu0 %v847
        %1119 = vmatprep.subr.mxu0 0.0
        %1120 = vmatpush1.msra.mxu0 %v848
        %1121 = vmatprep.subr.mxu0 0.0
        %1122 = vmatpush1.msra.mxu0 %v849
        %1123 = vmatprep.subr.mxu0 0.0
        %1124 = vmatpush1.msra.mxu0 %v850
        %1125 = vmatprep.subr.mxu0 0.0
        %1126 = vmatpush1.msra.mxu0 %v851
        %1127 = vmatprep.subr.mxu0 0.0
        %1128 = vmatpush1.msra.mxu0 %v852
        %1129 = vmatprep.subr.mxu0 0.0
        %1130 = vmatpush1.msra.mxu0 %v853
        %1131 = vmatprep.subr.mxu0 0.0
        %1132 = vmatpush1.msra.mxu0 %v854
        %1133 = vmatprep.subr.mxu0 0.0
        %1134 = vmatpush1.msra.mxu0 %v855
        %1135 = vmatprep.subr.mxu0 0.0
        %1136 = vmatpush1.msra.mxu0 %v856
        %1137 = vmatprep.subr.mxu0 0.0
        %1138 = vmatpush1.msra.mxu0 %v857
        %1139 = vmatprep.mubr.f32.mxu0 %v729
        %1140 = vmatmul.mubr.f32.gmra.mrb[0].mxu0 %v728
        %v1141 = vpop.f32.mrb[0].mxu0
        %v1142 = vadd.f32 %v1072, %v1141
        %v1143 = vpop.f32.mrb[0].mxu0
        %1144 = vdwg.mxu0
        %v1145 = vadd.f32 %v1142, %v721
        %v1146 = vld [vmem:[%s295] sm:$0xff]
        %v1147 = vld [vmem:[%s295 + $0x8] sm:$0xff]
        %v1148 = vld [vmem:[%s295 + $0x10] sm:$0xff]
        %v1149 = vld [vmem:[%s295 + $0x18] sm:$0xff]
        %v1150 = vld [vmem:[%s298] sm:$0x1]
        %v1152 = vlaneseq
        %v1153 = vshrl.u32 %v1152, 7
        %v1154 = vsub.s32 0, %v1153
        %v1155 = vrot.slane %v1150, %v1154
        %vm1157 = vcmask 261120
        %v1159 = vsel %vm1157, %v1145, 0
        %1161 = vmatprep.subr.mxu0 0.0
        %1162 = vmatpush1.msra.mxu0 %v1146
        %1163 = vmatprep.subr.mxu0 0.0
        %1164 = vmatpush1.msra.mxu0 %v1147
        %1165 = vmatprep.subr.mxu0 0.0
        %1166 = vmatpush1.msra.mxu0 %v1148
        %1167 = vmatprep.subr.mxu0 0.0
        %1168 = vmatpush1.msra.mxu0 %v1149
        %1169 = vmatprep.subr.mxu0 0.0
        %1170 = vmatpush1.msra.mxu0 0.0
        %1171 = vmatprep.subr.mxu0 0.0
        %1172 = vmatpush1.msra.mxu0 0.0
        %1173 = vmatprep.subr.mxu0 0.0
        %1174 = vmatpush1.msra.mxu0 0.0
        %1175 = vmatprep.subr.mxu0 0.0
        %1176 = vmatpush1.msra.mxu0 0.0
        %1177 = vmatprep.subr.mxu0 0.0
        %1178 = vmatpush1.msra.mxu0 0.0
        %1179 = vmatprep.subr.mxu0 0.0
        %1180 = vmatpush1.msra.mxu0 0.0
        %1181 = vmatprep.subr.mxu0 0.0
        %1182 = vmatpush1.msra.mxu0 0.0
        %1183 = vmatprep.subr.mxu0 0.0
        %1184 = vmatpush1.msra.mxu0 0.0
        %1185 = vmatprep.subr.mxu0 0.0
        %1186 = vmatpush1.msra.mxu0 0.0
        %1187 = vmatprep.subr.mxu0 0.0
        %1188 = vmatpush1.msra.mxu0 0.0
        %1189 = vmatprep.subr.mxu0 0.0
        %1190 = vmatpush1.msra.mxu0 0.0
        %1191 = vmatprep.subr.mxu0 0.0
        %1192 = vmatpush1.msra.mxu0 0.0
        %1193 = vmatprep.subr.mxu0 0.0
        %1194 = vmatpush1.msra.mxu0 0.0
        %1195 = vmatprep.subr.mxu0 0.0
        %1196 = vmatpush1.msra.mxu0 0.0
        %1197 = vmatprep.subr.mxu0 0.0
        %1198 = vmatpush1.msra.mxu0 0.0
        %1199 = vmatprep.subr.mxu0 0.0
        %1200 = vmatpush1.msra.mxu0 0.0
        %1201 = vmatprep.subr.mxu0 0.0
        %1202 = vmatpush1.msra.mxu0 0.0
        %1203 = vmatprep.subr.mxu0 0.0
        %1204 = vmatpush1.msra.mxu0 0.0
        %1205 = vmatprep.subr.mxu0 0.0
        %1206 = vmatpush1.msra.mxu0 0.0
        %1207 = vmatprep.subr.mxu0 0.0
        %1208 = vmatpush1.msra.mxu0 0.0
        %1209 = vmatprep.subr.mxu0 0.0
        %1210 = vmatpush1.msra.mxu0 0.0
        %1211 = vmatprep.subr.mxu0 0.0
        %1212 = vmatpush1.msra.mxu0 0.0
        %1213 = vmatprep.subr.mxu0 0.0
        %1214 = vmatpush1.msra.mxu0 0.0
        %1215 = vmatprep.subr.mxu0 0.0
        %1216 = vmatpush1.msra.mxu0 0.0
        %1217 = vmatprep.subr.mxu0 0.0
        %1218 = vmatpush1.msra.mxu0 0.0
        %1219 = vmatprep.subr.mxu0 0.0
        %1220 = vmatpush1.msra.mxu0 0.0
        %1221 = vmatprep.subr.mxu0 0.0
        %1222 = vmatpush1.msra.mxu0 0.0
        %1223 = vmatprep.subr.mxu0 0.0
        %1224 = vmatpush1.msra.mxu0 0.0
        %1225 = vmatprep.mubr.f32.mxu0 0.0
        %1226 = vmatmul.mubr.f32.gmra.mrb[0].mxu0 %v1159
        %v1227 = vpop.f32.mrb[0].mxu0
        %v1228 = vadd.f32 %v1155, %v1227
        %v1229 = vpop.f32.mrb[0].mxu0
        %1230 = vdwg.mxu0
        %v1231 = vsel %vm1157, %v1228, 0.0
        %1232 = vadd.xlane.f32.xlu0 %v1231
        %v1233 = vpop.xlane.xlu0 %1232
        %v1234 = vrcp.pop 32.0
        %v1235 = vmul.f32 %v1233, %v1234
        %v1236 = vsub.f32 %v1228, %v1235
        %v1237 = vmul.f32 %v1236, %v1236
        %v1238 = vsel %vm1157, %v1237, 0.0
        %1239 = vadd.xlane.f32.xlu0 %v1238
        %v1240 = vpop.xlane.xlu0 %1239
        %v1241 = vmul.f32 %v1240, 0.032258064
        %v1242 = vrsqrt.pop %v1241
        %v1243 = vmul.f32 %v1236, %v1242
        %v1244 = vadd.f32 %v1243, 1e-05
        %1245 = vst.msk [vmem:[#allocation2] sm:$0xff] %vm1157, %v1244
        // Predicated region
        $region53: #{tpu_custom_call.1} parent=47 // pred_check
          %p1246 = pneg %p194
        $region54: #{tpu_custom_call.1} parent=47 // pred_check_branch
          %1248 = sbr.rel (%p1246) target = $region56
        $region55: #{tpu_custom_call.1} parent=47 // pred_region
          %s1250 = ssub.s32 128, 128
          %1251 = vsyncadd [#allocation3], %s1250
          %s1253 = sshll.u32 [#allocation2], 4
          %s1254 = int_to_ptr.vmem [resolvable:$true] %s1253
          %1256 = dma.vmem_to_hbm [thread:$0]  %s1254, 128, %s7, [#allocation3]
        $region56: #{tpu_custom_call.1} parent=47 // pred_fallthru
          _
        // Predicated region
        $region57: #{tpu_custom_call.1} parent=47 // pred_check
          %p1257 = pneg %p194
        $region58: #{tpu_custom_call.1} parent=47 // pred_check_branch
          %1259 = sbr.rel (%p1257) target = $region60
        $region59: #{tpu_custom_call.1} parent=47 // pred_region
          %1260 = dma.done [#allocation3], 128
        $region60: #{tpu_custom_call.1} parent=47 // pred_fallthru
          _
      $region48: #{tpu_custom_call.1} parent=5 // pred_fallthru
        _
      %p1261 = scmp.le.s32.totalorder 2, %s14
      // Predicated region
      $region61: #{tpu_custom_call.1} parent=5 // pred_check
        %p1262 = pneg %p1261
      $region62: #{tpu_custom_call.1} parent=5 // pred_check_branch
        %1264 = sbr.rel (%p1262) target = $region64
      $region63: #{tpu_custom_call.1} parent=5 // pred_region
        %s1265 = ssub.s32 %s14, 2
      $region64: #{tpu_custom_call.1} parent=5 // pred_fallthru
        _
    $region6: #{tpu_custom_call.1} parent=1 // loop_footer
      %s18 = sadd.s32 1, %s14
    $region7: #{tpu_custom_call.1} parent=1 // loop_footer_branch
      %13 = sbr.rel target = $region3
    $region8: #{tpu_custom_call.1} parent=1 // loop_exit
      _
    %1266 = vsyncpa [#allocation3], 1
    %s1267 = scalar_lea.sflag [#allocation3], 1
    %1268 = vsyncpa %s1267, 1

</llo_original>
